<compile_context>
chip_gen: v5e
topology: v5e:2x2
jax: 0.10.0
libtpu: 0.0.40
codegen_flags: <defaults>
</compile_context>

<pallas_src>
import functools

import jax
import jax.numpy as jnp
from jax import lax
from jax.experimental import pallas as pl
from jax.experimental.pallas import tpu as pltpu

LN_EPS = 1e-5  # PyTorch nn.LayerNorm default eps


def _etc_kernel(k_ref, q_ref, v_ref, vi_ref, vj_ref, bx_ref, doc_ref,
                gamma_ref, beta_ref, ctx_ref, w_ref, co_ref, w_acc_ref,
                *, heads, leaky):
    # All program ids read at kernel top level (never inside pl.when bodies).
    b = pl.program_id(0)
    it = pl.program_id(1)
    n_it = pl.num_programs(1)

    H = heads
    TI = k_ref.shape[1]          # i rows in this tile (K rows / output rows)
    L = q_ref.shape[1]           # full j extent (softmax / contraction axis)
    D = q_ref.shape[2]
    d = D // H

    neg_inf = jnp.float32(-jnp.inf)
    inv_h = jnp.float32(1.0 / H)

    # Rebuild the pad-mask tile in-register from the two validity vectors.
    valid_i = vi_ref[0] != 0                         # (TI, 1) bool
    valid_j = vj_ref[0] != 0                         # (1, L)  bool
    keep = jnp.logical_and(valid_i, valid_j)         # (TI, L) bool

    # --- phase 1: per-head K.Q^T -> planned VMEM scratch + one-pass LN stats
    s1 = jnp.zeros((TI, L), jnp.float32)
    s2 = jnp.zeros((TI, L), jnp.float32)
    for h in range(H):
        kh = k_ref[0, :, h * d:(h + 1) * d]          # (TI, d) bf16
        qh = q_ref[0, :, h * d:(h + 1) * d]          # (L,  d) bf16
        co_h = lax.dot_general(kh, qh, (((1,), (1,)), ((), ())),
                               preferred_element_type=jnp.float32)
        co_ref[h] = co_h                             # bounded live set (~3 tiles)
        s1 = s1 + co_h
        s2 = s2 + co_h * co_h

    mean = s1 * inv_h                                # (TI, L)
    var = jnp.maximum(s2 * inv_h - mean * mean, 0.0)
    rstd = lax.rsqrt(var + jnp.float32(LN_EPS))

    # --- phase 2: LN -> mask -> safe softmax -> P @ V; direct per-head stores
    w_part = jnp.zeros((1, L), jnp.float32)
    for h in range(H):
        nco = (co_ref[h] - mean) * rstd * gamma_ref[h] + beta_ref[h]
        if leaky > 0.0:
            # module: nco + float(leaky > 0) * leaky_relu(nco, leaky)
            nco = nco + jnp.where(nco >= 0.0, nco, leaky * nco)
        nco = jnp.where(keep, nco, neg_inf)

        m = jnp.max(nco, axis=-1, keepdims=True)
        m = jnp.where(jnp.isfinite(m), m, 0.0)       # fully-masked rows
        e = jnp.exp(nco - m)                         # masked entries -> 0
        s = jnp.sum(e, axis=-1, keepdims=True)
        inv_s = jnp.where(s > 0.0, 1.0 / s, 0.0)     # removeNaN equivalent
        p = e * inv_s                                # exact softmax probs

        vh = v_ref[0, :, h * d:(h + 1) * d]          # (L, d) bf16
        ctx_h = jnp.dot(p.astype(jnp.bfloat16), vh,
                        preferred_element_type=jnp.float32)
        ctx_ref[0, :, h * d:(h + 1) * d] = ctx_h.astype(ctx_ref.dtype)
        w_part = w_part + jnp.sum(p, axis=0, keepdims=True)   # (1, L)

    # --- doc-level weights: accumulate over i tiles, finalize on last tile --
    @pl.when(it == 0)
    def _():
        w_acc_ref[...] = jnp.zeros_like(w_acc_ref)

    w_acc_ref[...] += w_part

    @pl.when(it == n_it - 1)
    def _():
        doc = doc_ref[b]                             # scalar f32 (SMEM)
        wv = (w_acc_ref[...] * inv_h) / doc          # mean over heads, / doc
        wv = jnp.where(bx_ref[0] != 0, neg_inf, wv)  # mask packed positions
        mw = jnp.max(wv, axis=-1, keepdims=True)
        mw = jnp.where(jnp.isfinite(mw), mw, 0.0)
        ew = jnp.exp(wv - mw)
        sw = jnp.sum(ew, axis=-1, keepdims=True)
        inv_sw = jnp.where(sw > 0.0, 1.0 / sw, 0.0)
        w_ref[...] = (ew * inv_sw)[None].astype(w_ref.dtype)


def _round_up(x, m):
    return ((x + m - 1) // m) * m


def _default_vmem_budget_bytes():
    # v7x TensorCores have 64 MiB of VMEM; v5e / v6e have 128 MiB.  Stay
    # conservative unless a 128-MiB generation is positively identified.
    try:
        kind = jax.devices()[0].device_kind.lower()
    except Exception:
        kind = ""
    if ("v5" in kind) or ("v6" in kind):
        return 96 * 1024 * 1024
    return 40 * 1024 * 1024


def _vmem_bytes(ti, L, D, H, ctx_bytes, qv_buffers):
    return (H * ti * L * 4                  # co scratch (f32)
            + qv_buffers * 2 * L * D * 2    # Q and V blocks (bf16)
            + 2 * ti * D * 2                # K tile, double-buffered bf16
            + 2 * ti * D * ctx_bytes        # ctx tile, double-buffered
            + 2 * ti * 4                    # validity column tile (int32)
            + 8 * L * 4)                    # validity row / bx / w out / w_acc


def _pick_tile_i(L, D, H, ctx_bytes, qv_buffers, budget, cap=512):
    """Largest multiple-of-8 i-tile <= cap whose VMEM footprint fits budget."""
    # NOTE: for very large L even TI=8 may not fit; that regime wants the
    # flash-style j-tiled restructure (see module TODO) -- best effort here.
    hi = min(cap, _round_up(L, 8))
    best = 8
    for t in range(8, hi + 1, 8):
        if _vmem_bytes(t, L, D, H, ctx_bytes, qv_buffers) <= budget:
            best = t
    return best


def etc_context(K, Q, V, doc_sizes, valid_mask, bx_packed, gamma, beta,
                heads, leaky=-1.0, tile_i=None, ctx_dtype=jnp.float32,
                vmem_budget_bytes=None):
    """ETCContext.forward as a Pallas TPU kernel.

    valid_mask: (B, L), truthy for real (non-padded) positions.  The module's
    (B, L, L) pad_mask is assumed to equal valid[:, :, None] & valid[:, None, :].
    Set ctx_dtype=jnp.bfloat16 to halve the context writeback stream if the
    consumer accepts it.
    """
    B, L, D = K.shape
    H = heads
    assert D % H == 0, "hidden dim must be divisible by heads"

    budget = (_default_vmem_budget_bytes() if vmem_budget_bytes is None
              else int(vmem_budget_bytes))
    ctx_bytes = jnp.dtype(ctx_dtype).itemsize

    # Q/V blocks are invariant along the i grid axis -> single buffer them.
    qv_index = lambda b, i: (b, 0, 0)
    try:
        q_spec = pl.BlockSpec((1, L, D), qv_index, pipeline_mode=pl.Buffered(1))
        v_spec = pl.BlockSpec((1, L, D), qv_index, pipeline_mode=pl.Buffered(1))
        qv_buffers = 1
    except Exception:  # older jax without BlockSpec.pipeline_mode / pl.Buffered
        q_spec = pl.BlockSpec((1, L, D), qv_index)
        v_spec = pl.BlockSpec((1, L, D), qv_index)
        qv_buffers = 2

    TI = (_pick_tile_i(L, D, H, ctx_bytes, qv_buffers, budget)
          if tile_i is None else int(tile_i))
    assert TI % 8 == 0, "tile_i must be a multiple of 8"

    # Pad only the i axis (K rows / validity column / context rows).
    Lp = _round_up(L, TI)
    NI = Lp // TI

    kb = K.astype(jnp.bfloat16)
    qb = Q.astype(jnp.bfloat16)
    vb = V.astype(jnp.bfloat16)

    valid = (valid_mask.reshape(B, L) != 0)
    vi = valid.astype(jnp.int32)              # int32: native (8,128) sublane tiling
    if Lp != L:
        kb = jnp.pad(kb, ((0, 0), (0, Lp - L), (0, 0)))
        vi = jnp.pad(vi, ((0, 0), (0, Lp - L)))   # padded rows -> fully masked
    vi = vi.reshape(B, Lp, 1)
    vj = valid.astype(jnp.int8).reshape(B, 1, L)
    bx = bx_packed.astype(jnp.int8).reshape(B, 1, L)

    docf = doc_sizes.astype(jnp.float32).reshape(B)
    gammaf = gamma.astype(jnp.float32).reshape(H)
    betaf = beta.astype(jnp.float32).reshape(H)

    est = _vmem_bytes(TI, L, D, H, ctx_bytes, qv_buffers)
    vmem_limit = int(max(est + (8 << 20), 32 << 20))

    kernel = functools.partial(_etc_kernel, heads=H, leaky=float(leaky))

    ctx, w = pl.pallas_call(
        kernel,
        out_shape=(jax.ShapeDtypeStruct((B, Lp, D), ctx_dtype),
                   jax.ShapeDtypeStruct((B, 1, L), jnp.float32)),
        grid=(B, NI),
        in_specs=[
            pl.BlockSpec((1, TI, D), lambda b, i: (b, i, 0)),   # K rows (i-tiled)
            q_spec,                                             # Q (full j)
            v_spec,                                             # V (full j)
            pl.BlockSpec((1, TI, 1), lambda b, i: (b, i, 0)),   # validity column
            pl.BlockSpec((1, 1, L), lambda b, i: (b, 0, 0)),    # validity row
            pl.BlockSpec((1, 1, L), lambda b, i: (b, 0, 0)),    # bx_packed (int8)
            pl.BlockSpec(memory_space=pltpu.MemorySpace.SMEM),  # doc_sizes
            pl.BlockSpec(memory_space=pltpu.MemorySpace.SMEM),  # gamma
            pl.BlockSpec(memory_space=pltpu.MemorySpace.SMEM),  # beta
        ],
        out_specs=(
            pl.BlockSpec((1, TI, D), lambda b, i: (b, i, 0)),   # context rows
            pl.BlockSpec((1, 1, L), lambda b, i: (b, 0, 0)),    # doc weights
        ),
        scratch_shapes=[
            pltpu.VMEM((H, TI, L), jnp.float32),                # co per head
            pltpu.VMEM((1, L), jnp.float32),                    # weight accum
        ],
        compiler_params=pltpu.CompilerParams(
            dimension_semantics=("parallel", "arbitrary"),
            vmem_limit_bytes=vmem_limit),
    )(kb, qb, vb, vi, vj, bx, docf, gammaf, betaf)

    return ctx[:, :L, :], w.reshape(B, L, 1)


def etc_reference(K, Q, V, doc_sizes, pad_mask, bx_packed, gamma, beta,
                  heads, leaky=-1.0):
    """Pure-JAX reference (mirrors the kernel's bf16 matmul policy)."""
    B, L, D = K.shape
    H = heads
    d = D // H
    th = lambda x: jnp.transpose(x.astype(jnp.bfloat16).reshape(B, L, H, d),
                                 (0, 2, 1, 3))
    Kh, Qh, Vh = th(K), th(Q), th(V)
    co = jnp.einsum('bhid,bhjd->bhij', Kh, Qh,
                    preferred_element_type=jnp.float32)
    mean = co.mean(axis=1, keepdims=True)
    var = ((co - mean) ** 2).mean(axis=1, keepdims=True)
    nco = (co - mean) / jnp.sqrt(var + LN_EPS)
    nco = nco * gamma[None, :, None, None] + beta[None, :, None, None]
    if leaky > 0.0:
        nco = nco + jnp.where(nco >= 0.0, nco, leaky * nco)
    nco = jnp.where(pad_mask[:, None, :, :], nco, -jnp.inf)
    cs = jax.nn.softmax(nco, axis=-1)
    cs = jnp.where(jnp.isnan(cs), 0.0, cs)
    w = cs.sum(axis=-2).mean(axis=1) / doc_sizes.reshape(B, 1)
    w = jnp.where(bx_packed, -jnp.inf, w)
    w = jax.nn.softmax(w, axis=-1)
    w = jnp.where(jnp.isnan(w), 0.0, w)
    ctx = jnp.einsum('bhij,bhjd->bhid', cs.astype(jnp.bfloat16), Vh,
                     preferred_element_type=jnp.float32)
    Vcat = jnp.transpose(ctx, (0, 2, 1, 3)).reshape(B, L, D)
    return Vcat, w[..., None]


if __name__ == "__main__":
    B, H, D = 2, 4, 32
    gamma = 1.0 + 0.1 * jnp.arange(H, dtype=jnp.float32)
    beta = 0.05 * jnp.arange(H, dtype=jnp.float32)

    run = jax.jit(etc_context, static_argnames=("heads", "leaky", "tile_i"))

    def make_case(L, lengths):
        kk, kq, kv = jax.random.split(jax.random.PRNGKey(0), 3)
        K = jax.random.normal(kk, (B, L, D), jnp.float32)
        Q = jax.random.normal(kq, (B, L, D), jnp.float32)
        V = jax.random.normal(kv, (B, L, D), jnp.float32)
        pos = jnp.arange(L)
        valid = pos[None, :] < lengths[:, None]              # (B, L)
        pad_mask = valid[:, :, None] & valid[:, None, :]     # (B, L, L)
        bx = jnp.logical_not(valid)                          # (B, L)
        doc = lengths.astype(jnp.float32)[:, None]           # (B, 1)
        return K, Q, V, valid, pad_mask, bx, doc

    cases = [
        (8, jnp.array([6, 5], jnp.int32), -1.0, None),   # single i-tile
        (8, jnp.array([6, 5], jnp.int32), 0.2, None),    # leaky branch
        (11, jnp.array([9, 7], jnp.int32), 0.2, 8),      # padded tail + 2 i-tiles
    ]
    for L, lengths, lk, ti in cases:
        K, Q, V, valid, pad_mask, bx, doc = make_case(L, lengths)
        Vout, Wout = run(K, Q, V, doc, valid, bx, gamma, beta,
                         heads=H, leaky=lk, tile_i=ti)
        jax.block_until_ready((Vout, Wout))
        Vref, Wref = etc_reference(K, Q, V, doc, pad_mask, bx, gamma, beta,
                                   heads=H, leaky=lk)
        assert Vout.shape == (B, L, D) and Wout.shape == (B, L, 1)
        assert jnp.allclose(Vout, Vref, atol=2e-2, rtol=2e-2), \
            float(jnp.max(jnp.abs(Vout - Vref)))
        assert jnp.allclose(Wout, Wref, atol=2e-2, rtol=2e-2), \
            float(jnp.max(jnp.abs(Wout - Wref)))

    print("KERNEL_OK")
</pallas_src>

<mosaic_0001>
module attributes {stable_mosaic.version = 11 : i64} {
  func.func @_etc_kernel(%arg0: i32, %arg1: i32, %arg2: memref<1x8x32xbf16, #tpu.memory_space<vmem>>, %arg3: memref<1x8x32xbf16, #tpu.memory_space<vmem>>, %arg4: memref<1x8x32xbf16, #tpu.memory_space<vmem>>, %arg5: memref<1x8x1xi32, #tpu.memory_space<vmem>>, %arg6: memref<1x1x8xi8, #tpu.memory_space<vmem>>, %arg7: memref<1x1x8xi8, #tpu.memory_space<vmem>>, %arg8: memref<2xf32, #tpu.memory_space<smem>>, %arg9: memref<4xf32, #tpu.memory_space<smem>>, %arg10: memref<4xf32, #tpu.memory_space<smem>>, %arg11: memref<1x8x32xf32, #tpu.memory_space<vmem>>, %arg12: memref<1x1x8xf32, #tpu.memory_space<vmem>>, %arg13: memref<4x8x8xf32, #tpu.memory_space<vmem>>, %arg14: memref<1x8xf32, #tpu.memory_space<vmem>>) attributes {dimension_semantics = [#tpu.dimension_semantics<parallel>, #tpu.dimension_semantics<arbitrary>], iteration_bounds = array<i64: 2, 1>, scalar_prefetch = 0 : i64, scratch_operands = 2 : i64, tpu.core_type = #tpu.core_type<tc>, window_params = [{transform_indices = @transform_0, window_bounds = array<i64: 1, 8, 32>}, {pipeline_mode = #tpu.pipeline_mode<synchronous>, transform_indices = @transform_1, window_bounds = array<i64: 1, 8, 32>}, {pipeline_mode = #tpu.pipeline_mode<synchronous>, transform_indices = @transform_2, window_bounds = array<i64: 1, 8, 32>}, {transform_indices = @transform_3, window_bounds = array<i64: 1, 8, 1>}, {transform_indices = @transform_4, window_bounds = array<i64: 1, 1, 8>}, {transform_indices = @transform_5, window_bounds = array<i64: 1, 1, 8>}, {transform_indices = @transform_6, window_bounds = array<i64: 2>}, {transform_indices = @transform_7, window_bounds = array<i64: 4>}, {transform_indices = @transform_8, window_bounds = array<i64: 4>}, {transform_indices = @transform_9, window_bounds = array<i64: 1, 8, 32>}, {transform_indices = @transform_10, window_bounds = array<i64: 1, 1, 8>}]} {
    %c0 = arith.constant 0 : index
    %c0_0 = arith.constant 0 : index
    %c0_1 = arith.constant 0 : index
    %0 = vector.load %arg5[%c0, %c0_0, %c0_1] : memref<1x8x1xi32, #tpu.memory_space<vmem>>, vector<1x8x1xi32>
    %1 = vector.shape_cast %0 : vector<1x8x1xi32> to vector<8x1xi32>
    %c0_i32 = arith.constant 0 : i32
    %2 = vector.broadcast %c0_i32 : i32 to vector<8x1xi32>
    %3 = arith.cmpi ne, %1, %2 : vector<8x1xi32>
    %c0_2 = arith.constant 0 : index
    %c0_3 = arith.constant 0 : index
    %c0_4 = arith.constant 0 : index
    %4 = vector.load %arg6[%c0_2, %c0_3, %c0_4] : memref<1x1x8xi8, #tpu.memory_space<vmem>>, vector<1x1x8xi8>
    %5 = vector.shape_cast %4 : vector<1x1x8xi8> to vector<1x8xi8>
    %c0_i8 = arith.constant 0 : i8
    %6 = vector.broadcast %c0_i8 : i8 to vector<1x8xi8>
    %7 = arith.cmpi ne, %5, %6 : vector<1x8xi8>
    %8 = vector.broadcast %3 : vector<8x1xi1> to vector<8x8xi1>
    %9 = vector.broadcast %7 : vector<1x8xi1> to vector<8x8xi1>
    %10 = arith.andi %8, %9 : vector<8x8xi1>
    %cst = arith.constant 0.000000e+00 : f32
    %11 = vector.broadcast %cst : f32 to vector<8x8xf32>
    %cst_5 = arith.constant 0.000000e+00 : f32
    %12 = vector.broadcast %cst_5 : f32 to vector<8x8xf32>
    %c0_6 = arith.constant 0 : index
    %c0_7 = arith.constant 0 : index
    %c0_8 = arith.constant 0 : index
    %13 = vector.load %arg2[%c0_6, %c0_7, %c0_8] : memref<1x8x32xbf16, #tpu.memory_space<vmem>>, vector<1x8x8xbf16>
    %14 = vector.shape_cast %13 : vector<1x8x8xbf16> to vector<8x8xbf16>
    %c0_9 = arith.constant 0 : index
    %c0_10 = arith.constant 0 : index
    %c0_11 = arith.constant 0 : index
    %15 = vector.load %arg3[%c0_9, %c0_10, %c0_11] : memref<1x8x32xbf16, #tpu.memory_space<vmem>>, vector<1x8x8xbf16>
    %16 = vector.shape_cast %15 : vector<1x8x8xbf16> to vector<8x8xbf16>
    %cst_12 = arith.constant dense<0.000000e+00> : vector<8x8xf32>
    %17 = tpu.matmul %14, %16, %cst_12 {dimension_numbers = #tpu.dot_dimension_numbers<[1], [1], [0], [0], [0, 0, 1, 0], [], []>} : vector<8x8xbf16>, vector<8x8xbf16>, vector<8x8xf32> -> vector<8x8xf32>
    %c0_13 = arith.constant 0 : index
    %c0_14 = arith.constant 0 : index
    %c0_15 = arith.constant 0 : index
    %18 = vector.load %arg13[%c0_13, %c0_14, %c0_15] : memref<4x8x8xf32, #tpu.memory_space<vmem>>, vector<1x8x8xf32>
    %19 = vector.shape_cast %18 : vector<1x8x8xf32> to vector<8x8xf32>
    %20 = vector.shape_cast %17 : vector<8x8xf32> to vector<1x8x8xf32>
    tpu.vector_store %arg13[%c0_13, %c0_14, %c0_15], %20 {strides = array<i32>} : memref<4x8x8xf32, #tpu.memory_space<vmem>>, vector<1x8x8xf32>,
    %21 = arith.addf %11, %17 : vector<8x8xf32>
    %22 = arith.mulf %17, %17 : vector<8x8xf32>
    %23 = arith.addf %12, %22 : vector<8x8xf32>
    %c0_16 = arith.constant 0 : index
    %c0_17 = arith.constant 0 : index
    %c8 = arith.constant 8 : index
    %24 = vector.load %arg2[%c0_16, %c0_17, %c8] : memref<1x8x32xbf16, #tpu.memory_space<vmem>>, vector<1x8x8xbf16>
    %25 = vector.shape_cast %24 : vector<1x8x8xbf16> to vector<8x8xbf16>
    %c0_18 = arith.constant 0 : index
    %c0_19 = arith.constant 0 : index
    %c8_20 = arith.constant 8 : index
    %26 = vector.load %arg3[%c0_18, %c0_19, %c8_20] : memref<1x8x32xbf16, #tpu.memory_space<vmem>>, vector<1x8x8xbf16>
    %27 = vector.shape_cast %26 : vector<1x8x8xbf16> to vector<8x8xbf16>
    %cst_21 = arith.constant dense<0.000000e+00> : vector<8x8xf32>
    %28 = tpu.matmul %25, %27, %cst_21 {dimension_numbers = #tpu.dot_dimension_numbers<[1], [1], [0], [0], [0, 0, 1, 0], [], []>} : vector<8x8xbf16>, vector<8x8xbf16>, vector<8x8xf32> -> vector<8x8xf32>
    %c1 = arith.constant 1 : index
    %c0_22 = arith.constant 0 : index
    %c0_23 = arith.constant 0 : index
    %29 = vector.load %arg13[%c1, %c0_22, %c0_23] : memref<4x8x8xf32, #tpu.memory_space<vmem>>, vector<1x8x8xf32>
    %30 = vector.shape_cast %29 : vector<1x8x8xf32> to vector<8x8xf32>
    %31 = vector.shape_cast %28 : vector<8x8xf32> to vector<1x8x8xf32>
    tpu.vector_store %arg13[%c1, %c0_22, %c0_23], %31 {strides = array<i32>} : memref<4x8x8xf32, #tpu.memory_space<vmem>>, vector<1x8x8xf32>,
    %32 = arith.addf %21, %28 : vector<8x8xf32>
    %33 = arith.mulf %28, %28 : vector<8x8xf32>
    %34 = arith.addf %23, %33 : vector<8x8xf32>
    %c0_24 = arith.constant 0 : index
    %c0_25 = arith.constant 0 : index
    %c16 = arith.constant 16 : index
    %35 = vector.load %arg2[%c0_24, %c0_25, %c16] : memref<1x8x32xbf16, #tpu.memory_space<vmem>>, vector<1x8x8xbf16>
    %36 = vector.shape_cast %35 : vector<1x8x8xbf16> to vector<8x8xbf16>
    %c0_26 = arith.constant 0 : index
    %c0_27 = arith.constant 0 : index
    %c16_28 = arith.constant 16 : index
    %37 = vector.load %arg3[%c0_26, %c0_27, %c16_28] : memref<1x8x32xbf16, #tpu.memory_space<vmem>>, vector<1x8x8xbf16>
    %38 = vector.shape_cast %37 : vector<1x8x8xbf16> to vector<8x8xbf16>
    %cst_29 = arith.constant dense<0.000000e+00> : vector<8x8xf32>
    %39 = tpu.matmul %36, %38, %cst_29 {dimension_numbers = #tpu.dot_dimension_numbers<[1], [1], [0], [0], [0, 0, 1, 0], [], []>} : vector<8x8xbf16>, vector<8x8xbf16>, vector<8x8xf32> -> vector<8x8xf32>
    %c2 = arith.constant 2 : index
    %c0_30 = arith.constant 0 : index
    %c0_31 = arith.constant 0 : index
    %40 = vector.load %arg13[%c2, %c0_30, %c0_31] : memref<4x8x8xf32, #tpu.memory_space<vmem>>, vector<1x8x8xf32>
    %41 = vector.shape_cast %40 : vector<1x8x8xf32> to vector<8x8xf32>
    %42 = vector.shape_cast %39 : vector<8x8xf32> to vector<1x8x8xf32>
    tpu.vector_store %arg13[%c2, %c0_30, %c0_31], %42 {strides = array<i32>} : memref<4x8x8xf32, #tpu.memory_space<vmem>>, vector<1x8x8xf32>,
    %43 = arith.addf %32, %39 : vector<8x8xf32>
    %44 = arith.mulf %39, %39 : vector<8x8xf32>
    %45 = arith.addf %34, %44 : vector<8x8xf32>
    %c0_32 = arith.constant 0 : index
    %c0_33 = arith.constant 0 : index
    %c24 = arith.constant 24 : index
    %46 = vector.load %arg2[%c0_32, %c0_33, %c24] : memref<1x8x32xbf16, #tpu.memory_space<vmem>>, vector<1x8x8xbf16>
    %47 = vector.shape_cast %46 : vector<1x8x8xbf16> to vector<8x8xbf16>
    %c0_34 = arith.constant 0 : index
    %c0_35 = arith.constant 0 : index
    %c24_36 = arith.constant 24 : index
    %48 = vector.load %arg3[%c0_34, %c0_35, %c24_36] : memref<1x8x32xbf16, #tpu.memory_space<vmem>>, vector<1x8x8xbf16>
    %49 = vector.shape_cast %48 : vector<1x8x8xbf16> to vector<8x8xbf16>
    %cst_37 = arith.constant dense<0.000000e+00> : vector<8x8xf32>
    %50 = tpu.matmul %47, %49, %cst_37 {dimension_numbers = #tpu.dot_dimension_numbers<[1], [1], [0], [0], [0, 0, 1, 0], [], []>} : vector<8x8xbf16>, vector<8x8xbf16>, vector<8x8xf32> -> vector<8x8xf32>
    %c3 = arith.constant 3 : index
    %c0_38 = arith.constant 0 : index
    %c0_39 = arith.constant 0 : index
    %51 = vector.load %arg13[%c3, %c0_38, %c0_39] : memref<4x8x8xf32, #tpu.memory_space<vmem>>, vector<1x8x8xf32>
    %52 = vector.shape_cast %51 : vector<1x8x8xf32> to vector<8x8xf32>
    %53 = vector.shape_cast %50 : vector<8x8xf32> to vector<1x8x8xf32>
    tpu.vector_store %arg13[%c3, %c0_38, %c0_39], %53 {strides = array<i32>} : memref<4x8x8xf32, #tpu.memory_space<vmem>>, vector<1x8x8xf32>,
    %54 = arith.addf %43, %50 : vector<8x8xf32>
    %55 = arith.mulf %50, %50 : vector<8x8xf32>
    %56 = arith.addf %45, %55 : vector<8x8xf32>
    %cst_40 = arith.constant 2.500000e-01 : f32
    %57 = vector.broadcast %cst_40 : f32 to vector<8x8xf32>
    %58 = arith.mulf %54, %57 : vector<8x8xf32>
    %cst_41 = arith.constant 2.500000e-01 : f32
    %59 = vector.broadcast %cst_41 : f32 to vector<8x8xf32>
    %60 = arith.mulf %56, %59 : vector<8x8xf32>
    %61 = arith.mulf %58, %58 : vector<8x8xf32>
    %62 = arith.subf %60, %61 : vector<8x8xf32>
    %cst_42 = arith.constant 0.000000e+00 : f32
    %63 = vector.broadcast %cst_42 : f32 to vector<8x8xf32>
    %64 = arith.maximumf %62, %63 : vector<8x8xf32>
    %cst_43 = arith.constant 9.99999974E-6 : f32
    %65 = vector.broadcast %cst_43 : f32 to vector<8x8xf32>
    %66 = arith.addf %64, %65 : vector<8x8xf32>
    %67 = math.rsqrt %66 : vector<8x8xf32>
    %cst_44 = arith.constant 0.000000e+00 : f32
    %68 = vector.broadcast %cst_44 : f32 to vector<1x8xf32>
    %c0_45 = arith.constant 0 : index
    %c0_46 = arith.constant 0 : index
    %c0_47 = arith.constant 0 : index
    %69 = vector.load %arg13[%c0_45, %c0_46, %c0_47] : memref<4x8x8xf32, #tpu.memory_space<vmem>>, vector<1x8x8xf32>
    %70 = vector.shape_cast %69 : vector<1x8x8xf32> to vector<8x8xf32>
    %71 = arith.subf %70, %58 : vector<8x8xf32>
    %72 = arith.mulf %71, %67 : vector<8x8xf32>
    %c0_48 = arith.constant 0 : index
    %73 = memref.load %arg9[%c0_48] : memref<4xf32, #tpu.memory_space<smem>>
    %74 = vector.broadcast %73 : f32 to vector<8x8xf32>
    %75 = arith.mulf %72, %74 : vector<8x8xf32>
    %c0_49 = arith.constant 0 : index
    %76 = memref.load %arg10[%c0_49] : memref<4xf32, #tpu.memory_space<smem>>
    %77 = vector.broadcast %76 : f32 to vector<8x8xf32>
    %78 = arith.addf %75, %77 : vector<8x8xf32>
    %cst_50 = arith.constant 0xFF800000 : f32
    %79 = vector.broadcast %cst_50 : f32 to vector<8x8xf32>
    %80 = arith.select %10, %78, %79 : vector<8x8xi1>, vector<8x8xf32>
    %cst_51 = arith.constant dense<0xFF800000> : vector<8xf32>
    %81 = vector.multi_reduction <maximumf>, %80, %cst_51 [1] : vector<8x8xf32> to vector<8xf32>
    %82 = vector.shape_cast %81 : vector<8xf32> to vector<8x1xf32>
    %83 = tpu.weird %82 : vector<8x1xf32> -> vector<8x1xi1>
    %cst_52 = arith.constant dense<true> : vector<8x1xi1>
    %84 = arith.xori %83, %cst_52 : vector<8x1xi1>
    %cst_53 = arith.constant 0.000000e+00 : f32
    %85 = vector.broadcast %cst_53 : f32 to vector<8x1xf32>
    %86 = arith.select %84, %82, %85 : vector<8x1xi1>, vector<8x1xf32>
    %87 = vector.broadcast %86 : vector<8x1xf32> to vector<8x8xf32>
    %88 = arith.subf %80, %87 : vector<8x8xf32>
    %89 = math.exp %88 : vector<8x8xf32>
    %cst_54 = arith.constant dense<0.000000e+00> : vector<8xf32>
    %90 = vector.multi_reduction <add>, %89, %cst_54 [1] : vector<8x8xf32> to vector<8xf32>
    %91 = vector.shape_cast %90 : vector<8xf32> to vector<8x1xf32>
    %cst_55 = arith.constant 0.000000e+00 : f32
    %92 = vector.broadcast %cst_55 : f32 to vector<8x1xf32>
    %93 = arith.cmpf ogt, %91, %92 : vector<8x1xf32>
    %cst_56 = arith.constant 1.000000e+00 : f32
    %94 = vector.broadcast %cst_56 : f32 to vector<8x1xf32>
    %95 = arith.divf %94, %91 : vector<8x1xf32>
    %cst_57 = arith.constant 0.000000e+00 : f32
    %96 = vector.broadcast %cst_57 : f32 to vector<8x1xf32>
    %97 = arith.select %93, %95, %96 : vector<8x1xi1>, vector<8x1xf32>
    %98 = vector.broadcast %97 : vector<8x1xf32> to vector<8x8xf32>
    %99 = arith.mulf %89, %98 : vector<8x8xf32>
    %c0_58 = arith.constant 0 : index
    %c0_59 = arith.constant 0 : index
    %c0_60 = arith.constant 0 : index
    %100 = vector.load %arg4[%c0_58, %c0_59, %c0_60] : memref<1x8x32xbf16, #tpu.memory_space<vmem>>, vector<1x8x8xbf16>
    %101 = vector.shape_cast %100 : vector<1x8x8xbf16> to vector<8x8xbf16>
    %102 = arith.truncf %99 : vector<8x8xf32> to vector<8x8xbf16>
    %cst_61 = arith.constant dense<0.000000e+00> : vector<8x8xf32>
    %103 = tpu.matmul %102, %101, %cst_61 {dimension_numbers = #tpu.dot_dimension_numbers<[1], [0], [0], [1], [0, 0, 1, 1], [], []>} : vector<8x8xbf16>, vector<8x8xbf16>, vector<8x8xf32> -> vector<8x8xf32>
    %c0_62 = arith.constant 0 : index
    %c0_63 = arith.constant 0 : index
    %c0_64 = arith.constant 0 : index
    %104 = vector.load %arg11[%c0_62, %c0_63, %c0_64] : memref<1x8x32xf32, #tpu.memory_space<vmem>>, vector<1x8x8xf32>
    %105 = vector.shape_cast %104 : vector<1x8x8xf32> to vector<8x8xf32>
    %106 = vector.shape_cast %103 : vector<8x8xf32> to vector<1x8x8xf32>
    tpu.vector_store %arg11[%c0_62, %c0_63, %c0_64], %106 {strides = array<i32>} : memref<1x8x32xf32, #tpu.memory_space<vmem>>, vector<1x8x8xf32>,
    %cst_65 = arith.constant dense<0.000000e+00> : vector<8xf32>
    %107 = vector.multi_reduction <add>, %99, %cst_65 [0] : vector<8x8xf32> to vector<8xf32>
    %108 = vector.shape_cast %107 : vector<8xf32> to vector<1x8xf32>
    %109 = arith.addf %68, %108 : vector<1x8xf32>
    %c1_66 = arith.constant 1 : index
    %c0_67 = arith.constant 0 : index
    %c0_68 = arith.constant 0 : index
    %110 = vector.load %arg13[%c1_66, %c0_67, %c0_68] : memref<4x8x8xf32, #tpu.memory_space<vmem>>, vector<1x8x8xf32>
    %111 = vector.shape_cast %110 : vector<1x8x8xf32> to vector<8x8xf32>
    %112 = arith.subf %111, %58 : vector<8x8xf32>
    %113 = arith.mulf %112, %67 : vector<8x8xf32>
    %c1_69 = arith.constant 1 : index
    %114 = memref.load %arg9[%c1_69] : memref<4xf32, #tpu.memory_space<smem>>
    %115 = vector.broadcast %114 : f32 to vector<8x8xf32>
    %116 = arith.mulf %113, %115 : vector<8x8xf32>
    %c1_70 = arith.constant 1 : index
    %117 = memref.load %arg10[%c1_70] : memref<4xf32, #tpu.memory_space<smem>>
    %118 = vector.broadcast %117 : f32 to vector<8x8xf32>
    %119 = arith.addf %116, %118 : vector<8x8xf32>
    %cst_71 = arith.constant 0xFF800000 : f32
    %120 = vector.broadcast %cst_71 : f32 to vector<8x8xf32>
    %121 = arith.select %10, %119, %120 : vector<8x8xi1>, vector<8x8xf32>
    %cst_72 = arith.constant dense<0xFF800000> : vector<8xf32>
    %122 = vector.multi_reduction <maximumf>, %121, %cst_72 [1] : vector<8x8xf32> to vector<8xf32>
    %123 = vector.shape_cast %122 : vector<8xf32> to vector<8x1xf32>
    %124 = tpu.weird %123 : vector<8x1xf32> -> vector<8x1xi1>
    %cst_73 = arith.constant dense<true> : vector<8x1xi1>
    %125 = arith.xori %124, %cst_73 : vector<8x1xi1>
    %cst_74 = arith.constant 0.000000e+00 : f32
    %126 = vector.broadcast %cst_74 : f32 to vector<8x1xf32>
    %127 = arith.select %125, %123, %126 : vector<8x1xi1>, vector<8x1xf32>
    %128 = vector.broadcast %127 : vector<8x1xf32> to vector<8x8xf32>
    %129 = arith.subf %121, %128 : vector<8x8xf32>
    %130 = math.exp %129 : vector<8x8xf32>
    %cst_75 = arith.constant dense<0.000000e+00> : vector<8xf32>
    %131 = vector.multi_reduction <add>, %130, %cst_75 [1] : vector<8x8xf32> to vector<8xf32>
    %132 = vector.shape_cast %131 : vector<8xf32> to vector<8x1xf32>
    %cst_76 = arith.constant 0.000000e+00 : f32
    %133 = vector.broadcast %cst_76 : f32 to vector<8x1xf32>
    %134 = arith.cmpf ogt, %132, %133 : vector<8x1xf32>
    %cst_77 = arith.constant 1.000000e+00 : f32
    %135 = vector.broadcast %cst_77 : f32 to vector<8x1xf32>
    %136 = arith.divf %135, %132 : vector<8x1xf32>
    %cst_78 = arith.constant 0.000000e+00 : f32
    %137 = vector.broadcast %cst_78 : f32 to vector<8x1xf32>
    %138 = arith.select %134, %136, %137 : vector<8x1xi1>, vector<8x1xf32>
    %139 = vector.broadcast %138 : vector<8x1xf32> to vector<8x8xf32>
    %140 = arith.mulf %130, %139 : vector<8x8xf32>
    %c0_79 = arith.constant 0 : index
    %c0_80 = arith.constant 0 : index
    %c8_81 = arith.constant 8 : index
    %141 = vector.load %arg4[%c0_79, %c0_80, %c8_81] : memref<1x8x32xbf16, #tpu.memory_space<vmem>>, vector<1x8x8xbf16>
    %142 = vector.shape_cast %141 : vector<1x8x8xbf16> to vector<8x8xbf16>
    %143 = arith.truncf %140 : vector<8x8xf32> to vector<8x8xbf16>
    %cst_82 = arith.constant dense<0.000000e+00> : vector<8x8xf32>
    %144 = tpu.matmul %143, %142, %cst_82 {dimension_numbers = #tpu.dot_dimension_numbers<[1], [0], [0], [1], [0, 0, 1, 1], [], []>} : vector<8x8xbf16>, vector<8x8xbf16>, vector<8x8xf32> -> vector<8x8xf32>
    %c0_83 = arith.constant 0 : index
    %c0_84 = arith.constant 0 : index
    %c8_85 = arith.constant 8 : index
    %145 = vector.load %arg11[%c0_83, %c0_84, %c8_85] : memref<1x8x32xf32, #tpu.memory_space<vmem>>, vector<1x8x8xf32>
    %146 = vector.shape_cast %145 : vector<1x8x8xf32> to vector<8x8xf32>
    %147 = vector.shape_cast %144 : vector<8x8xf32> to vector<1x8x8xf32>
    tpu.vector_store %arg11[%c0_83, %c0_84, %c8_85], %147 {strides = array<i32>} : memref<1x8x32xf32, #tpu.memory_space<vmem>>, vector<1x8x8xf32>,
    %cst_86 = arith.constant dense<0.000000e+00> : vector<8xf32>
    %148 = vector.multi_reduction <add>, %140, %cst_86 [0] : vector<8x8xf32> to vector<8xf32>
    %149 = vector.shape_cast %148 : vector<8xf32> to vector<1x8xf32>
    %150 = arith.addf %109, %149 : vector<1x8xf32>
    %c2_87 = arith.constant 2 : index
    %c0_88 = arith.constant 0 : index
    %c0_89 = arith.constant 0 : index
    %151 = vector.load %arg13[%c2_87, %c0_88, %c0_89] : memref<4x8x8xf32, #tpu.memory_space<vmem>>, vector<1x8x8xf32>
    %152 = vector.shape_cast %151 : vector<1x8x8xf32> to vector<8x8xf32>
    %153 = arith.subf %152, %58 : vector<8x8xf32>
    %154 = arith.mulf %153, %67 : vector<8x8xf32>
    %c2_90 = arith.constant 2 : index
    %155 = memref.load %arg9[%c2_90] : memref<4xf32, #tpu.memory_space<smem>>
    %156 = vector.broadcast %155 : f32 to vector<8x8xf32>
    %157 = arith.mulf %154, %156 : vector<8x8xf32>
    %c2_91 = arith.constant 2 : index
    %158 = memref.load %arg10[%c2_91] : memref<4xf32, #tpu.memory_space<smem>>
    %159 = vector.broadcast %158 : f32 to vector<8x8xf32>
    %160 = arith.addf %157, %159 : vector<8x8xf32>
    %cst_92 = arith.constant 0xFF800000 : f32
    %161 = vector.broadcast %cst_92 : f32 to vector<8x8xf32>
    %162 = arith.select %10, %160, %161 : vector<8x8xi1>, vector<8x8xf32>
    %cst_93 = arith.constant dense<0xFF800000> : vector<8xf32>
    %163 = vector.multi_reduction <maximumf>, %162, %cst_93 [1] : vector<8x8xf32> to vector<8xf32>
    %164 = vector.shape_cast %163 : vector<8xf32> to vector<8x1xf32>
    %165 = tpu.weird %164 : vector<8x1xf32> -> vector<8x1xi1>
    %cst_94 = arith.constant dense<true> : vector<8x1xi1>
    %166 = arith.xori %165, %cst_94 : vector<8x1xi1>
    %cst_95 = arith.constant 0.000000e+00 : f32
    %167 = vector.broadcast %cst_95 : f32 to vector<8x1xf32>
    %168 = arith.select %166, %164, %167 : vector<8x1xi1>, vector<8x1xf32>
    %169 = vector.broadcast %168 : vector<8x1xf32> to vector<8x8xf32>
    %170 = arith.subf %162, %169 : vector<8x8xf32>
    %171 = math.exp %170 : vector<8x8xf32>
    %cst_96 = arith.constant dense<0.000000e+00> : vector<8xf32>
    %172 = vector.multi_reduction <add>, %171, %cst_96 [1] : vector<8x8xf32> to vector<8xf32>
    %173 = vector.shape_cast %172 : vector<8xf32> to vector<8x1xf32>
    %cst_97 = arith.constant 0.000000e+00 : f32
    %174 = vector.broadcast %cst_97 : f32 to vector<8x1xf32>
    %175 = arith.cmpf ogt, %173, %174 : vector<8x1xf32>
    %cst_98 = arith.constant 1.000000e+00 : f32
    %176 = vector.broadcast %cst_98 : f32 to vector<8x1xf32>
    %177 = arith.divf %176, %173 : vector<8x1xf32>
    %cst_99 = arith.constant 0.000000e+00 : f32
    %178 = vector.broadcast %cst_99 : f32 to vector<8x1xf32>
    %179 = arith.select %175, %177, %178 : vector<8x1xi1>, vector<8x1xf32>
    %180 = vector.broadcast %179 : vector<8x1xf32> to vector<8x8xf32>
    %181 = arith.mulf %171, %180 : vector<8x8xf32>
    %c0_100 = arith.constant 0 : index
    %c0_101 = arith.constant 0 : index
    %c16_102 = arith.constant 16 : index
    %182 = vector.load %arg4[%c0_100, %c0_101, %c16_102] : memref<1x8x32xbf16, #tpu.memory_space<vmem>>, vector<1x8x8xbf16>
    %183 = vector.shape_cast %182 : vector<1x8x8xbf16> to vector<8x8xbf16>
    %184 = arith.truncf %181 : vector<8x8xf32> to vector<8x8xbf16>
    %cst_103 = arith.constant dense<0.000000e+00> : vector<8x8xf32>
    %185 = tpu.matmul %184, %183, %cst_103 {dimension_numbers = #tpu.dot_dimension_numbers<[1], [0], [0], [1], [0, 0, 1, 1], [], []>} : vector<8x8xbf16>, vector<8x8xbf16>, vector<8x8xf32> -> vector<8x8xf32>
    %c0_104 = arith.constant 0 : index
    %c0_105 = arith.constant 0 : index
    %c16_106 = arith.constant 16 : index
    %186 = vector.load %arg11[%c0_104, %c0_105, %c16_106] : memref<1x8x32xf32, #tpu.memory_space<vmem>>, vector<1x8x8xf32>
    %187 = vector.shape_cast %186 : vector<1x8x8xf32> to vector<8x8xf32>
    %188 = vector.shape_cast %185 : vector<8x8xf32> to vector<1x8x8xf32>
    tpu.vector_store %arg11[%c0_104, %c0_105, %c16_106], %188 {strides = array<i32>} : memref<1x8x32xf32, #tpu.memory_space<vmem>>, vector<1x8x8xf32>,
    %cst_107 = arith.constant dense<0.000000e+00> : vector<8xf32>
    %189 = vector.multi_reduction <add>, %181, %cst_107 [0] : vector<8x8xf32> to vector<8xf32>
    %190 = vector.shape_cast %189 : vector<8xf32> to vector<1x8xf32>
    %191 = arith.addf %150, %190 : vector<1x8xf32>
    %c3_108 = arith.constant 3 : index
    %c0_109 = arith.constant 0 : index
    %c0_110 = arith.constant 0 : index
    %192 = vector.load %arg13[%c3_108, %c0_109, %c0_110] : memref<4x8x8xf32, #tpu.memory_space<vmem>>, vector<1x8x8xf32>
    %193 = vector.shape_cast %192 : vector<1x8x8xf32> to vector<8x8xf32>
    %194 = arith.subf %193, %58 : vector<8x8xf32>
    %195 = arith.mulf %194, %67 : vector<8x8xf32>
    %c3_111 = arith.constant 3 : index
    %196 = memref.load %arg9[%c3_111] : memref<4xf32, #tpu.memory_space<smem>>
    %197 = vector.broadcast %196 : f32 to vector<8x8xf32>
    %198 = arith.mulf %195, %197 : vector<8x8xf32>
    %c3_112 = arith.constant 3 : index
    %199 = memref.load %arg10[%c3_112] : memref<4xf32, #tpu.memory_space<smem>>
    %200 = vector.broadcast %199 : f32 to vector<8x8xf32>
    %201 = arith.addf %198, %200 : vector<8x8xf32>
    %cst_113 = arith.constant 0xFF800000 : f32
    %202 = vector.broadcast %cst_113 : f32 to vector<8x8xf32>
    %203 = arith.select %10, %201, %202 : vector<8x8xi1>, vector<8x8xf32>
    %cst_114 = arith.constant dense<0xFF800000> : vector<8xf32>
    %204 = vector.multi_reduction <maximumf>, %203, %cst_114 [1] : vector<8x8xf32> to vector<8xf32>
    %205 = vector.shape_cast %204 : vector<8xf32> to vector<8x1xf32>
    %206 = tpu.weird %205 : vector<8x1xf32> -> vector<8x1xi1>
    %cst_115 = arith.constant dense<true> : vector<8x1xi1>
    %207 = arith.xori %206, %cst_115 : vector<8x1xi1>
    %cst_116 = arith.constant 0.000000e+00 : f32
    %208 = vector.broadcast %cst_116 : f32 to vector<8x1xf32>
    %209 = arith.select %207, %205, %208 : vector<8x1xi1>, vector<8x1xf32>
    %210 = vector.broadcast %209 : vector<8x1xf32> to vector<8x8xf32>
    %211 = arith.subf %203, %210 : vector<8x8xf32>
    %212 = math.exp %211 : vector<8x8xf32>
    %cst_117 = arith.constant dense<0.000000e+00> : vector<8xf32>
    %213 = vector.multi_reduction <add>, %212, %cst_117 [1] : vector<8x8xf32> to vector<8xf32>
    %214 = vector.shape_cast %213 : vector<8xf32> to vector<8x1xf32>
    %cst_118 = arith.constant 0.000000e+00 : f32
    %215 = vector.broadcast %cst_118 : f32 to vector<8x1xf32>
    %216 = arith.cmpf ogt, %214, %215 : vector<8x1xf32>
    %cst_119 = arith.constant 1.000000e+00 : f32
    %217 = vector.broadcast %cst_119 : f32 to vector<8x1xf32>
    %218 = arith.divf %217, %214 : vector<8x1xf32>
    %cst_120 = arith.constant 0.000000e+00 : f32
    %219 = vector.broadcast %cst_120 : f32 to vector<8x1xf32>
    %220 = arith.select %216, %218, %219 : vector<8x1xi1>, vector<8x1xf32>
    %221 = vector.broadcast %220 : vector<8x1xf32> to vector<8x8xf32>
    %222 = arith.mulf %212, %221 : vector<8x8xf32>
    %c0_121 = arith.constant 0 : index
    %c0_122 = arith.constant 0 : index
    %c24_123 = arith.constant 24 : index
    %223 = vector.load %arg4[%c0_121, %c0_122, %c24_123] : memref<1x8x32xbf16, #tpu.memory_space<vmem>>, vector<1x8x8xbf16>
    %224 = vector.shape_cast %223 : vector<1x8x8xbf16> to vector<8x8xbf16>
    %225 = arith.truncf %222 : vector<8x8xf32> to vector<8x8xbf16>
    %cst_124 = arith.constant dense<0.000000e+00> : vector<8x8xf32>
    %226 = tpu.matmul %225, %224, %cst_124 {dimension_numbers = #tpu.dot_dimension_numbers<[1], [0], [0], [1], [0, 0, 1, 1], [], []>} : vector<8x8xbf16>, vector<8x8xbf16>, vector<8x8xf32> -> vector<8x8xf32>
    %c0_125 = arith.constant 0 : index
    %c0_126 = arith.constant 0 : index
    %c24_127 = arith.constant 24 : index
    %227 = vector.load %arg11[%c0_125, %c0_126, %c24_127] : memref<1x8x32xf32, #tpu.memory_space<vmem>>, vector<1x8x8xf32>
    %228 = vector.shape_cast %227 : vector<1x8x8xf32> to vector<8x8xf32>
    %229 = vector.shape_cast %226 : vector<8x8xf32> to vector<1x8x8xf32>
    tpu.vector_store %arg11[%c0_125, %c0_126, %c24_127], %229 {strides = array<i32>} : memref<1x8x32xf32, #tpu.memory_space<vmem>>, vector<1x8x8xf32>,
    %cst_128 = arith.constant dense<0.000000e+00> : vector<8xf32>
    %230 = vector.multi_reduction <add>, %222, %cst_128 [0] : vector<8x8xf32> to vector<8xf32>
    %231 = vector.shape_cast %230 : vector<8xf32> to vector<1x8xf32>
    %232 = arith.addf %191, %231 : vector<1x8xf32>
    %c0_i32_129 = arith.constant 0 : i32
    %233 = arith.cmpi eq, %arg1, %c0_i32_129 : i32
    %234 = arith.extui %233 : i1 to i32
    %c0_i32_130 = arith.constant 0 : i32
    %235 = arith.cmpi ne, %234, %c0_i32_130 : i32
    scf.if %235 {
      %cst_139 = arith.constant 0.000000e+00 : f32
      %242 = vector.broadcast %cst_139 : f32 to vector<1x8xf32>
      %c0_140 = arith.constant 0 : index
      %c0_141 = arith.constant 0 : index
      %243 = vector.load %arg14[%c0_140, %c0_141] : memref<1x8xf32, #tpu.memory_space<vmem>>, vector<1x8xf32>
      tpu.vector_store %arg14[%c0_140, %c0_141], %242 {strides = array<i32>} : memref<1x8xf32, #tpu.memory_space<vmem>>, vector<1x8xf32>,
    } else {
    }
    %c0_131 = arith.constant 0 : index
    %c0_132 = arith.constant 0 : index
    %236 = vector.load %arg14[%c0_131, %c0_132] : memref<1x8xf32, #tpu.memory_space<vmem>>, vector<1x8xf32>
    %237 = arith.addf %236, %232 : vector<1x8xf32>
    %c0_133 = arith.constant 0 : index
    %c0_134 = arith.constant 0 : index
    %238 = vector.load %arg14[%c0_133, %c0_134] : memref<1x8xf32, #tpu.memory_space<vmem>>, vector<1x8xf32>
    tpu.vector_store %arg14[%c0_133, %c0_134], %237 {strides = array<i32>} : memref<1x8xf32, #tpu.memory_space<vmem>>, vector<1x8xf32>,
    %c0_i32_135 = arith.constant 0 : i32
    %239 = arith.cmpi eq, %arg1, %c0_i32_135 : i32
    %240 = arith.extui %239 : i1 to i32
    %cst_136 = arith.constant 2.500000e-01 : f32
    %cst_137 = arith.constant 0xFF800000 : f32
    %c0_i32_138 = arith.constant 0 : i32
    %241 = arith.cmpi ne, %240, %c0_i32_138 : i32
    scf.if %241 {
      %242 = arith.index_cast %arg0 : i32 to index
      %243 = memref.load %arg8[%242] : memref<2xf32, #tpu.memory_space<smem>>
      %c0_139 = arith.constant 0 : index
      %c0_140 = arith.constant 0 : index
      %244 = vector.load %arg14[%c0_139, %c0_140] : memref<1x8xf32, #tpu.memory_space<vmem>>, vector<1x8xf32>
      %245 = vector.broadcast %cst_136 : f32 to vector<1x8xf32>
      %246 = arith.mulf %244, %245 : vector<1x8xf32>
      %247 = vector.broadcast %243 : f32 to vector<1x8xf32>
      %248 = arith.divf %246, %247 : vector<1x8xf32>
      %c0_141 = arith.constant 0 : index
      %c0_142 = arith.constant 0 : index
      %c0_143 = arith.constant 0 : index
      %249 = vector.load %arg7[%c0_141, %c0_142, %c0_143] : memref<1x1x8xi8, #tpu.memory_space<vmem>>, vector<1x1x8xi8>
      %250 = vector.shape_cast %249 : vector<1x1x8xi8> to vector<1x8xi8>
      %c0_i8_144 = arith.constant 0 : i8
      %251 = vector.broadcast %c0_i8_144 : i8 to vector<1x8xi8>
      %252 = arith.cmpi ne, %250, %251 : vector<1x8xi8>
      %253 = vector.broadcast %cst_137 : f32 to vector<1x8xf32>
      %254 = arith.select %252, %253, %248 : vector<1x8xi1>, vector<1x8xf32>
      %cst_145 = arith.constant dense<0xFF800000> : vector<1xf32>
      %255 = vector.multi_reduction <maximumf>, %254, %cst_145 [1] : vector<1x8xf32> to vector<1xf32>
      %256 = vector.shape_cast %255 : vector<1xf32> to vector<1x1xf32>
      %257 = tpu.weird %256 : vector<1x1xf32> -> vector<1x1xi1>
      %cst_146 = arith.constant dense<true> : vector<1x1xi1>
      %258 = arith.xori %257, %cst_146 : vector<1x1xi1>
      %cst_147 = arith.constant 0.000000e+00 : f32
      %259 = vector.broadcast %cst_147 : f32 to vector<1x1xf32>
      %260 = arith.select %258, %256, %259 : vector<1x1xi1>, vector<1x1xf32>
      %261 = vector.broadcast %260 : vector<1x1xf32> to vector<1x8xf32>
      %262 = arith.subf %254, %261 : vector<1x8xf32>
      %263 = math.exp %262 : vector<1x8xf32>
      %cst_148 = arith.constant dense<0.000000e+00> : vector<1xf32>
      %264 = vector.multi_reduction <add>, %263, %cst_148 [1] : vector<1x8xf32> to vector<1xf32>
      %265 = vector.shape_cast %264 : vector<1xf32> to vector<1x1xf32>
      %cst_149 = arith.constant 0.000000e+00 : f32
      %266 = vector.broadcast %cst_149 : f32 to vector<1x1xf32>
      %267 = arith.cmpf ogt, %265, %266 : vector<1x1xf32>
      %cst_150 = arith.constant 1.000000e+00 : f32
      %268 = vector.broadcast %cst_150 : f32 to vector<1x1xf32>
      %269 = arith.divf %268, %265 : vector<1x1xf32>
      %cst_151 = arith.constant 0.000000e+00 : f32
      %270 = vector.broadcast %cst_151 : f32 to vector<1x1xf32>
      %271 = arith.select %267, %269, %270 : vector<1x1xi1>, vector<1x1xf32>
      %272 = vector.broadcast %271 : vector<1x1xf32> to vector<1x8xf32>
      %273 = arith.mulf %263, %272 : vector<1x8xf32>
      %274 = vector.shape_cast %273 : vector<1x8xf32> to vector<1x1x8xf32>
      %c0_152 = arith.constant 0 : index
      %c0_153 = arith.constant 0 : index
      %c0_154 = arith.constant 0 : index
      %275 = vector.load %arg12[%c0_152, %c0_153, %c0_154] : memref<1x1x8xf32, #tpu.memory_space<vmem>>, vector<1x1x8xf32>
      tpu.vector_store %arg12[%c0_152, %c0_153, %c0_154], %274 {strides = array<i32>} : memref<1x1x8xf32, #tpu.memory_space<vmem>>, vector<1x1x8xf32>,
    } else {
    }
    return
  }
  func.func @transform_0(%arg0: i32, %arg1: i32) -> (i32, i32, i32) {
    %c0_i32 = arith.constant 0 : i32
    %c0_i32_0 = arith.constant 0 : i32
    return %arg0, %arg1, %c0_i32 : i32, i32, i32
  }
  func.func @transform_1(%arg0: i32, %arg1: i32) -> (i32, i32, i32) {
    %c0_i32 = arith.constant 0 : i32
    %c0_i32_0 = arith.constant 0 : i32
    %c0_i32_1 = arith.constant 0 : i32
    return %arg0, %c0_i32, %c0_i32_0 : i32, i32, i32
  }
  func.func @transform_2(%arg0: i32, %arg1: i32) -> (i32, i32, i32) {
    %c0_i32 = arith.constant 0 : i32
    %c0_i32_0 = arith.constant 0 : i32
    %c0_i32_1 = arith.constant 0 : i32
    return %arg0, %c0_i32, %c0_i32_0 : i32, i32, i32
  }
  func.func @transform_3(%arg0: i32, %arg1: i32) -> (i32, i32, i32) {
    %c0_i32 = arith.constant 0 : i32
    %c0_i32_0 = arith.constant 0 : i32
    return %arg0, %arg1, %c0_i32 : i32, i32, i32
  }
  func.func @transform_4(%arg0: i32, %arg1: i32) -> (i32, i32, i32) {
    %c0_i32 = arith.constant 0 : i32
    %c0_i32_0 = arith.constant 0 : i32
    %c0_i32_1 = arith.constant 0 : i32
    return %arg0, %c0_i32, %c0_i32_0 : i32, i32, i32
  }
  func.func @transform_5(%arg0: i32, %arg1: i32) -> (i32, i32, i32) {
    %c0_i32 = arith.constant 0 : i32
    %c0_i32_0 = arith.constant 0 : i32
    %c0_i32_1 = arith.constant 0 : i32
    return %arg0, %c0_i32, %c0_i32_0 : i32, i32, i32
  }
  func.func @transform_6(%arg0: i32, %arg1: i32) -> i32 {
    %c0_i32 = arith.constant 0 : i32
    %c0_i32_0 = arith.constant 0 : i32
    return %c0_i32 : i32
  }
  func.func @transform_7(%arg0: i32, %arg1: i32) -> i32 {
    %c0_i32 = arith.constant 0 : i32
    %c0_i32_0 = arith.constant 0 : i32
    return %c0_i32 : i32
  }
  func.func @transform_8(%arg0: i32, %arg1: i32) -> i32 {
    %c0_i32 = arith.constant 0 : i32
    %c0_i32_0 = arith.constant 0 : i32
    return %c0_i32 : i32
  }
  func.func @transform_9(%arg0: i32, %arg1: i32) -> (i32, i32, i32) {
    %c0_i32 = arith.constant 0 : i32
    %c0_i32_0 = arith.constant 0 : i32
    return %arg0, %arg1, %c0_i32 : i32, i32, i32
  }
  func.func @transform_10(%arg0: i32, %arg1: i32) -> (i32, i32, i32) {
    %c0_i32 = arith.constant 0 : i32
    %c0_i32_0 = arith.constant 0 : i32
    %c0_i32_1 = arith.constant 0 : i32
    return %arg0, %c0_i32, %c0_i32_0 : i32, i32, i32
  }
}

</mosaic_0001>

<llo_original>
// kernel: etc_context.1
$region0: #{etc_context.1}
  #allocation0 [shape = 'u32[]', space=smem, size = 0x4, offset = 0x4, fixed_abs, tag = 'smem constant byte address 0x4 - core index']
  #allocation1 [shape = 'u32[72,128]{1,0:T(1,128)}', space=vmem, size = 0x9000, scoped, tag = 'internal scratch']
  #allocation2 [shape = 'f32[4,8,8]{2,1,0:T(8,128)}', space=vmem, size = 0x4000, scoped, tag = 'scratch operand']
  #allocation3 [shape = 'f32[1,8]{1,0:T(1,128)}', space=vmem, size = 0x200, scoped, tag = 'scratch operand']
  %s0 = inlined_call_operand.vmem [shape: bf16[2,8,32], index: 0, kind: input, shape index: {}]
  %s1 = inlined_call_operand.vmem [shape: bf16[2,8,32], index: 1, kind: input, shape index: {}]
  %s2 = inlined_call_operand.vmem [shape: bf16[2,8,32], index: 2, kind: input, shape index: {}]
  %s3 = inlined_call_operand.vmem [shape: s32[2,8,1], index: 3, kind: input, shape index: {}]
  %s4 = inlined_call_operand.vmem [shape: s8[2,1,8], index: 4, kind: input, shape index: {}]
  %s5 = inlined_call_operand.vmem [shape: s8[2,1,8], index: 5, kind: input, shape index: {}]
  %s6 = inlined_call_operand.vmem [shape: f32[2], index: 6, kind: input, shape index: {}]
  %s7 = inlined_call_operand.vmem [shape: f32[4], index: 7, kind: input, shape index: {}]
  %s8 = inlined_call_operand.vmem [shape: f32[4], index: 8, kind: input, shape index: {}]
  %s9 = inlined_call_operand.hbm [shape: f32[2,8,32], index: 9, kind: output, shape index: {0}]
  %s10 = inlined_call_operand.hbm [shape: f32[2,1,8], index: 10, kind: output, shape index: {1}]
  %11 = xla_tuple %s9, %s10
  %s12 = sld [smem:[#allocation0]]
  $region97: #{etc_context.1} parent=0
    _
  %s14 = ssub.s32 1, %s12
  %s15 = scalar_select 0, %s14, %s12
  $region1: #{etc_context.1} parent=0
    #allocation4 [shape = 'u8[512]{0}', space=smem, size = 0x200, scoped, tag = 'input window, operand 6, single buffered']
    #allocation5 [shape = 's32[2]{0}', space=sflag, size = 0x8, scoped, tag = 'scoped memory for etc_context.1']
    #allocation6 [shape = 's32[2]{0}', space=sflag, size = 0x8, scoped, tag = 'scoped memory for etc_context.1']
    #allocation7 [shape = 'u8[512]{0}', space=smem, size = 0x200, scoped, tag = 'input window, operand 7, single buffered']
    #allocation8 [shape = 's32[1]{0}', space=sflag, size = 0x4, scoped, tag = 'scoped memory for etc_context.1']
    #allocation9 [shape = 'u8[512]{0}', space=smem, size = 0x200, scoped, tag = 'input window, operand 8, single buffered']
    #allocation10 [shape = 'u8[8192]{0}', space=vmem, size = 0x2000, scoped, tag = 'output window, operand 0']
    #allocation11 [shape = 'u8[1024]{0}', space=vmem, size = 0x400, scoped, tag = 'output window, operand 1']
    #allocation12 [shape = 's32[2]{0}', space=sflag, size = 0x8, scoped, tag = 'scoped memory for etc_context.1']
    %16 = vsyncpa [#allocation6], 0
    %17 = vsyncpa [#allocation8], 0
    %18 = vsyncpa [#allocation5], 0
    %s19 = scalar_lea.sflag [#allocation5], 1
    %20 = vsyncpa %s19, 0
    %21 = vsyncpa [#allocation12], 0
    %s22 = scalar_lea.sflag [#allocation12], 1
    %23 = vsyncpa %s22, 0
    loop: start=0, step=1, limit=4
    $region2: #{etc_context.1} parent=1 // loop_pre_header
      _
    $region3: #{etc_context.1} parent=1 // loop_header
      %s25 = sphi 0, %s29
      %p26 = scmp.ge.s32.totalorder %s25, 4
      %s32 = sphi 0, %s44
      %s33 = sphi 0, %s40
      %s34 = sphi 0, %s32
      %s35 = sphi 0, %s33
      %s36 = sphi 0, %s34
      %s37 = sphi 0, %s35
      %s49 = sphi 0, %s51
      %s52 = sphi 0, %s49
      %s53 = sphi 0, %s52
      %s69 = sphi 0, %s53
      %s75 = sphi 0, %s77
      %s78 = sphi 0, %s75
      %s79 = sphi 0, %s78
      %s95 = sphi 0, %s79
      %s101 = sphi 0, %s103
      %s104 = sphi 0, %s101
      %s105 = sphi 0, %s104
      %s121 = sphi 0, %s105
      %s129 = sphi 0, %s131
      %s132 = sphi 0, %s129
      %s133 = sphi 0, %s132
      %s149 = sphi 0, %s133
      %s155 = sphi 0, %s157
      %s158 = sphi 0, %s155
      %s159 = sphi 0, %s158
      %s175 = sphi 0, %s159
      %s181 = sphi 0, %s183
      %s184 = sphi 0, %s181
      %s185 = sphi 0, %s184
      %s201 = sphi 0, %s185
      %s205 = sphi 0, %s205
      %s207 = sphi 0, %s205
      %s208 = sphi 0, %s207
      %s222 = sphi 0, %s208
      %s226 = sphi 0, %s226
      %s228 = sphi 0, %s226
      %s229 = sphi 0, %s228
      %s243 = sphi 0, %s229
      %s247 = sphi 0, %s247
      %s249 = sphi 0, %s247
      %s250 = sphi 0, %s249
      %s264 = sphi 0, %s250
      %s272 = sphi 0, %s274
      %s275 = sphi 0, %s272
      %s276 = sphi 0, %s275
      %s292 = sphi 0, %s276
      %s298 = sphi 0, %s300
      %s301 = sphi 0, %s298
      %s302 = sphi 0, %s301
      %s318 = sphi 0, %s302
    $region4: #{etc_context.1} parent=1 // loop_header_branch
      %28 = sbr.rel (%p26) target = $region8
    $region5: #{etc_context.1} parent=1 // loop_body
      %s30 = ssub.s32 %s25, 1
      %s31 = ssub.s32 %s25, 2
      %s38 = sadd.s32 1, %s33
      %p39 = scmp.ge.s32.totalorder %s38, 1
      %s40 = scalar_select %p39, 0, %s38
      %s41 = sadd.s32 1, %s32
      %s42 = scalar_select %p39, %s41, %s32
      %p43 = scmp.ge.s32.totalorder %s42, 2
      %s44 = scalar_select %p43, 0, %s42
      %s45 = ssub.s32 %s32, %s44
      %s46 = ssub.s32 %s33, %s40
      %s47 = sor.u32 %s45, %s46
      %p48 = scmp.eq.s32.totalorder %s47, 0
      %s50 = sadd.s32 %s49, 1
      %s51 = scalar_select %p48, %s49, %s50
      %p54 = pneg %p48
      %p55 = scmp.eq.s32.totalorder %s25, 1
      %p56 = por %p54, %p55
      %p57 = scmp.ne.s32.totalorder %s49, %s52
      %p58 = scmp.eq.s32.totalorder %s25, 0
      %p59 = por %p57, %p58
      %p60 = scmp.ne.s32.totalorder %s49, %s52
      %p61 = scmp.eq.s32.totalorder %s30, 1
      %p62 = por %p60, %p61
      %p63 = scmp.ne.s32.totalorder %s52, %s53
      %p64 = scmp.eq.s32.totalorder %s30, 0
      %p65 = por %p63, %p64
      %p66 = scmp.ne.s32.totalorder %s52, %s53
      %p67 = scmp.eq.s32.totalorder %s31, 1
      %p68 = por %p66, %p67
      %p70 = scmp.ne.s32.totalorder %s53, %s69
      %p71 = scmp.eq.s32.totalorder %s31, 0
      %p72 = por %p70, %p71
      %s73 = ssub.s32 %s32, %s44
      %p74 = scmp.eq.s32.totalorder %s73, 0
      %s76 = sadd.s32 %s75, 1
      %s77 = scalar_select %p74, %s75, %s76
      %p80 = pneg %p74
      %p81 = scmp.eq.s32.totalorder %s25, 1
      %p82 = por %p80, %p81
      %p83 = scmp.ne.s32.totalorder %s75, %s78
      %p84 = scmp.eq.s32.totalorder %s25, 0
      %p85 = por %p83, %p84
      %p86 = scmp.ne.s32.totalorder %s75, %s78
      %p87 = scmp.eq.s32.totalorder %s30, 1
      %p88 = por %p86, %p87
      %p89 = scmp.ne.s32.totalorder %s78, %s79
      %p90 = scmp.eq.s32.totalorder %s30, 0
      %p91 = por %p89, %p90
      %p92 = scmp.ne.s32.totalorder %s78, %s79
      %p93 = scmp.eq.s32.totalorder %s31, 1
      %p94 = por %p92, %p93
      %p96 = scmp.ne.s32.totalorder %s79, %s95
      %p97 = scmp.eq.s32.totalorder %s31, 0
      %p98 = por %p96, %p97
      %s99 = ssub.s32 %s32, %s44
      %p100 = scmp.eq.s32.totalorder %s99, 0
      %s102 = sadd.s32 %s101, 1
      %s103 = scalar_select %p100, %s101, %s102
      %p106 = pneg %p100
      %p107 = scmp.eq.s32.totalorder %s25, 1
      %p108 = por %p106, %p107
      %p109 = scmp.ne.s32.totalorder %s101, %s104
      %p110 = scmp.eq.s32.totalorder %s25, 0
      %p111 = por %p109, %p110
      %p112 = scmp.ne.s32.totalorder %s101, %s104
      %p113 = scmp.eq.s32.totalorder %s30, 1
      %p114 = por %p112, %p113
      %p115 = scmp.ne.s32.totalorder %s104, %s105
      %p116 = scmp.eq.s32.totalorder %s30, 0
      %p117 = por %p115, %p116
      %p118 = scmp.ne.s32.totalorder %s104, %s105
      %p119 = scmp.eq.s32.totalorder %s31, 1
      %p120 = por %p118, %p119
      %p122 = scmp.ne.s32.totalorder %s105, %s121
      %p123 = scmp.eq.s32.totalorder %s31, 0
      %p124 = por %p122, %p123
      %s125 = ssub.s32 %s32, %s44
      %s126 = ssub.s32 %s33, %s40
      %s127 = sor.u32 %s125, %s126
      %p128 = scmp.eq.s32.totalorder %s127, 0
      %s130 = sadd.s32 %s129, 1
      %s131 = scalar_select %p128, %s129, %s130
      %p134 = pneg %p128
      %p135 = scmp.eq.s32.totalorder %s25, 1
      %p136 = por %p134, %p135
      %p137 = scmp.ne.s32.totalorder %s129, %s132
      %p138 = scmp.eq.s32.totalorder %s25, 0
      %p139 = por %p137, %p138
      %p140 = scmp.ne.s32.totalorder %s129, %s132
      %p141 = scmp.eq.s32.totalorder %s30, 1
      %p142 = por %p140, %p141
      %p143 = scmp.ne.s32.totalorder %s132, %s133
      %p144 = scmp.eq.s32.totalorder %s30, 0
      %p145 = por %p143, %p144
      %p146 = scmp.ne.s32.totalorder %s132, %s133
      %p147 = scmp.eq.s32.totalorder %s31, 1
      %p148 = por %p146, %p147
      %p150 = scmp.ne.s32.totalorder %s133, %s149
      %p151 = scmp.eq.s32.totalorder %s31, 0
      %p152 = por %p150, %p151
      %s153 = ssub.s32 %s32, %s44
      %p154 = scmp.eq.s32.totalorder %s153, 0
      %s156 = sadd.s32 %s155, 1
      %s157 = scalar_select %p154, %s155, %s156
      %p160 = pneg %p154
      %p161 = scmp.eq.s32.totalorder %s25, 1
      %p162 = por %p160, %p161
      %p163 = scmp.ne.s32.totalorder %s155, %s158
      %p164 = scmp.eq.s32.totalorder %s25, 0
      %p165 = por %p163, %p164
      %p166 = scmp.ne.s32.totalorder %s155, %s158
      %p167 = scmp.eq.s32.totalorder %s30, 1
      %p168 = por %p166, %p167
      %p169 = scmp.ne.s32.totalorder %s158, %s159
      %p170 = scmp.eq.s32.totalorder %s30, 0
      %p171 = por %p169, %p170
      %p172 = scmp.ne.s32.totalorder %s158, %s159
      %p173 = scmp.eq.s32.totalorder %s31, 1
      %p174 = por %p172, %p173
      %p176 = scmp.ne.s32.totalorder %s159, %s175
      %p177 = scmp.eq.s32.totalorder %s31, 0
      %p178 = por %p176, %p177
      %s179 = ssub.s32 %s32, %s44
      %p180 = scmp.eq.s32.totalorder %s179, 0
      %s182 = sadd.s32 %s181, 1
      %s183 = scalar_select %p180, %s181, %s182
      %p186 = pneg %p180
      %p187 = scmp.eq.s32.totalorder %s25, 1
      %p188 = por %p186, %p187
      %p189 = scmp.ne.s32.totalorder %s181, %s184
      %p190 = scmp.eq.s32.totalorder %s25, 0
      %p191 = por %p189, %p190
      %p192 = scmp.ne.s32.totalorder %s181, %s184
      %p193 = scmp.eq.s32.totalorder %s30, 1
      %p194 = por %p192, %p193
      %p195 = scmp.ne.s32.totalorder %s184, %s185
      %p196 = scmp.eq.s32.totalorder %s30, 0
      %p197 = por %p195, %p196
      %p198 = scmp.ne.s32.totalorder %s184, %s185
      %p199 = scmp.eq.s32.totalorder %s31, 1
      %p200 = por %p198, %p199
      %p202 = scmp.ne.s32.totalorder %s185, %s201
      %p203 = scmp.eq.s32.totalorder %s31, 0
      %p204 = por %p202, %p203
      %s206 = sadd.s32 %s205, 1
      %p209 = scmp.eq.s32.totalorder %s25, 1
      %p210 = scmp.ne.s32.totalorder %s205, %s207
      %p211 = scmp.eq.s32.totalorder %s25, 0
      %p212 = por %p210, %p211
      %p213 = scmp.ne.s32.totalorder %s205, %s207
      %p214 = scmp.eq.s32.totalorder %s30, 1
      %p215 = por %p213, %p214
      %p216 = scmp.ne.s32.totalorder %s207, %s208
      %p217 = scmp.eq.s32.totalorder %s30, 0
      %p218 = por %p216, %p217
      %p219 = scmp.ne.s32.totalorder %s207, %s208
      %p220 = scmp.eq.s32.totalorder %s31, 1
      %p221 = por %p219, %p220
      %p223 = scmp.ne.s32.totalorder %s208, %s222
      %p224 = scmp.eq.s32.totalorder %s31, 0
      %p225 = por %p223, %p224
      %s227 = sadd.s32 %s226, 1
      %p230 = scmp.eq.s32.totalorder %s25, 1
      %p231 = scmp.ne.s32.totalorder %s226, %s228
      %p232 = scmp.eq.s32.totalorder %s25, 0
      %p233 = por %p231, %p232
      %p234 = scmp.ne.s32.totalorder %s226, %s228
      %p235 = scmp.eq.s32.totalorder %s30, 1
      %p236 = por %p234, %p235
      %p237 = scmp.ne.s32.totalorder %s228, %s229
      %p238 = scmp.eq.s32.totalorder %s30, 0
      %p239 = por %p237, %p238
      %p240 = scmp.ne.s32.totalorder %s228, %s229
      %p241 = scmp.eq.s32.totalorder %s31, 1
      %p242 = por %p240, %p241
      %p244 = scmp.ne.s32.totalorder %s229, %s243
      %p245 = scmp.eq.s32.totalorder %s31, 0
      %p246 = por %p244, %p245
      %s248 = sadd.s32 %s247, 1
      %p251 = scmp.eq.s32.totalorder %s25, 1
      %p252 = scmp.ne.s32.totalorder %s247, %s249
      %p253 = scmp.eq.s32.totalorder %s25, 0
      %p254 = por %p252, %p253
      %p255 = scmp.ne.s32.totalorder %s247, %s249
      %p256 = scmp.eq.s32.totalorder %s30, 1
      %p257 = por %p255, %p256
      %p258 = scmp.ne.s32.totalorder %s249, %s250
      %p259 = scmp.eq.s32.totalorder %s30, 0
      %p260 = por %p258, %p259
      %p261 = scmp.ne.s32.totalorder %s249, %s250
      %p262 = scmp.eq.s32.totalorder %s31, 1
      %p263 = por %p261, %p262
      %p265 = scmp.ne.s32.totalorder %s250, %s264
      %p266 = scmp.eq.s32.totalorder %s31, 0
      %p267 = por %p265, %p266
      %s268 = ssub.s32 %s32, %s44
      %s269 = ssub.s32 %s33, %s40
      %s270 = sor.u32 %s268, %s269
      %p271 = scmp.eq.s32.totalorder %s270, 0
      %s273 = sadd.s32 %s272, 1
      %s274 = scalar_select %p271, %s272, %s273
      %p277 = pneg %p271
      %p278 = scmp.eq.s32.totalorder %s25, 1
      %p279 = por %p277, %p278
      %p280 = scmp.ne.s32.totalorder %s272, %s275
      %p281 = scmp.eq.s32.totalorder %s25, 0
      %p282 = por %p280, %p281
      %p283 = scmp.ne.s32.totalorder %s272, %s275
      %p284 = scmp.eq.s32.totalorder %s30, 1
      %p285 = por %p283, %p284
      %p286 = scmp.ne.s32.totalorder %s275, %s276
      %p287 = scmp.eq.s32.totalorder %s30, 0
      %p288 = por %p286, %p287
      %p289 = scmp.ne.s32.totalorder %s275, %s276
      %p290 = scmp.eq.s32.totalorder %s31, 1
      %p291 = por %p289, %p290
      %p293 = scmp.ne.s32.totalorder %s276, %s292
      %p294 = scmp.eq.s32.totalorder %s31, 0
      %p295 = por %p293, %p294
      %s296 = ssub.s32 %s32, %s44
      %p297 = scmp.eq.s32.totalorder %s296, 0
      %s299 = sadd.s32 %s298, 1
      %s300 = scalar_select %p297, %s298, %s299
      %p303 = pneg %p297
      %p304 = scmp.eq.s32.totalorder %s25, 1
      %p305 = por %p303, %p304
      %p306 = scmp.ne.s32.totalorder %s298, %s301
      %p307 = scmp.eq.s32.totalorder %s25, 0
      %p308 = por %p306, %p307
      %p309 = scmp.ne.s32.totalorder %s298, %s301
      %p310 = scmp.eq.s32.totalorder %s30, 1
      %p311 = por %p309, %p310
      %p312 = scmp.ne.s32.totalorder %s301, %s302
      %p313 = scmp.eq.s32.totalorder %s30, 0
      %p314 = por %p312, %p313
      %p315 = scmp.ne.s32.totalorder %s301, %s302
      %p316 = scmp.eq.s32.totalorder %s31, 1
      %p317 = por %p315, %p316
      %p319 = scmp.ne.s32.totalorder %s302, %s318
      %p320 = scmp.eq.s32.totalorder %s31, 0
      %p321 = por %p319, %p320
      %p322 = scmp.le.s32.totalorder 1, %s25
      %p323 = scmp.lt.s32.totalorder %s25, 3
      %p324 = pnand %p322, %p323
      %p325 = pneg %p324
      // Predicated region
      $region9: #{etc_context.1} parent=5 // pred_check
        _
      $region10: #{etc_context.1} parent=5 // pred_check_branch
        %327 = sbr.rel (%p324) target = $region12
      $region11: #{etc_context.1} parent=5 // pred_region
        %s328 = ssub.s32 %s25, 1
        // Predicated region
        $region13: #{etc_context.1} parent=11 // pred_check
          %p329 = pneg %p91
        $region14: #{etc_context.1} parent=11 // pred_check_branch
          %331 = sbr.rel (%p329) target = $region16
        $region15: #{etc_context.1} parent=11 // pred_region
          %p332 = scmp.lt.s32.totalorder %s34, 1
          %s333 = scalar_select %p332, %s34, 1
          %s334 = smul.addr %s333, 4
          %s335 = scalar_lea.vmem %s1, %s334
        $region16: #{etc_context.1} parent=11 // pred_fallthru
          _
        // Predicated region
        $region17: #{etc_context.1} parent=11 // pred_check
          %p336 = pneg %p117
        $region18: #{etc_context.1} parent=11 // pred_check_branch
          %338 = sbr.rel (%p336) target = $region20
        $region19: #{etc_context.1} parent=11 // pred_region
          %p339 = scmp.lt.s32.totalorder %s34, 1
          %s340 = scalar_select %p339, %s34, 1
          %s341 = smul.addr %s340, 4
          %s342 = scalar_lea.vmem %s2, %s341
        $region20: #{etc_context.1} parent=11 // pred_fallthru
          _
        // Predicated region
        $region21: #{etc_context.1} parent=11 // pred_check
          %p343 = pneg %p218
        $region22: #{etc_context.1} parent=11 // pred_check_branch
          %345 = sbr.rel (%p343) target = $region24
        $region23: #{etc_context.1} parent=11 // pred_region
          %347 = vsyncadd [#allocation6], 0
          %s349 = sshll.u32 %s6, 4
          %s350 = int_to_ptr.vmem [resolvable:$true] %s349
          %352 = dma.vmem_to_smem %s350, 16, [#allocation4], [#allocation6]
        $region24: #{etc_context.1} parent=11 // pred_fallthru
          _
        // Predicated region
        $region25: #{etc_context.1} parent=11 // pred_check
          %p353 = pneg %p239
        $region26: #{etc_context.1} parent=11 // pred_check_branch
          %355 = sbr.rel (%p353) target = $region28
        $region27: #{etc_context.1} parent=11 // pred_region
          %357 = vsyncadd [#allocation8], 0
          %s359 = sshll.u32 %s7, 4
          %s360 = int_to_ptr.vmem [resolvable:$true] %s359
          %362 = dma.vmem_to_smem %s360, 16, [#allocation7], [#allocation8]
        $region28: #{etc_context.1} parent=11 // pred_fallthru
          _
        // Predicated region
        $region29: #{etc_context.1} parent=11 // pred_check
          %p363 = pneg %p260
        $region30: #{etc_context.1} parent=11 // pred_check_branch
          %365 = sbr.rel (%p363) target = $region32
        $region31: #{etc_context.1} parent=11 // pred_region
          %367 = vsyncadd [#allocation8], 0
          %s369 = sshll.u32 %s8, 4
          %s370 = int_to_ptr.vmem [resolvable:$true] %s369
          %372 = dma.vmem_to_smem %s370, 16, [#allocation9], [#allocation8]
        $region32: #{etc_context.1} parent=11 // pred_fallthru
          _
      $region12: #{etc_context.1} parent=5 // pred_fallthru
        _
      %p373 = scmp.lt.s32.totalorder %s25, 2
      // Predicated region
      $region33: #{etc_context.1} parent=5 // pred_check
        %p374 = pneg %p373
      $region34: #{etc_context.1} parent=5 // pred_check_branch
        %376 = sbr.rel (%p374) target = $region36
      $region35: #{etc_context.1} parent=5 // pred_region
        // Predicated region
        $region37: #{etc_context.1} parent=35 // pred_check
          %p377 = pneg %p59
        $region38: #{etc_context.1} parent=35 // pred_check_branch
          %379 = sbr.rel (%p377) target = $region40
        $region39: #{etc_context.1} parent=35 // pred_region
          %p380 = scmp.lt.s32.totalorder %s32, 1
          %s381 = scalar_select %p380, %s32, 1
          %p382 = scmp.lt.s32.totalorder %s33, 0
          %s383 = scalar_select %p382, %s33, 0
          %s384 = sadd.s32 %s383, %s381
          %s385 = smul.addr %s384, 4
          %s386 = scalar_lea.vmem %s0, %s385
        $region40: #{etc_context.1} parent=35 // pred_fallthru
          _
        // Predicated region
        $region41: #{etc_context.1} parent=35 // pred_check
          %p387 = pneg %p139
        $region42: #{etc_context.1} parent=35 // pred_check_branch
          %389 = sbr.rel (%p387) target = $region44
        $region43: #{etc_context.1} parent=35 // pred_region
          %p390 = scmp.lt.s32.totalorder %s32, 1
          %s391 = scalar_select %p390, %s32, 1
          %p392 = scmp.lt.s32.totalorder %s33, 0
          %s393 = scalar_select %p392, %s33, 0
          %s394 = sadd.s32 %s393, %s391
          %s395 = smul.addr %s394, 8
          %s396 = scalar_lea.vmem %s3, %s395
        $region44: #{etc_context.1} parent=35 // pred_fallthru
          _
        // Predicated region
        $region45: #{etc_context.1} parent=35 // pred_check
          %p397 = pneg %p165
        $region46: #{etc_context.1} parent=35 // pred_check_branch
          %399 = sbr.rel (%p397) target = $region48
        $region47: #{etc_context.1} parent=35 // pred_region
          %p400 = scmp.lt.s32.totalorder %s32, 1
          %s401 = scalar_select %p400, %s32, 1
          %s402 = scalar_lea.vmem %s4, %s401
        $region48: #{etc_context.1} parent=35 // pred_fallthru
          _
        // Predicated region
        $region49: #{etc_context.1} parent=35 // pred_check
          %p403 = pneg %p191
        $region50: #{etc_context.1} parent=35 // pred_check_branch
          %405 = sbr.rel (%p403) target = $region52
        $region51: #{etc_context.1} parent=35 // pred_region
          %p406 = scmp.lt.s32.totalorder %s32, 1
          %s407 = scalar_select %p406, %s32, 1
          %s408 = scalar_lea.vmem %s5, %s407
        $region52: #{etc_context.1} parent=35 // pred_fallthru
          _
      $region36: #{etc_context.1} parent=5 // pred_fallthru
        _
      %p409 = scmp.le.s32.totalorder 1, %s25
      %p410 = scmp.lt.s32.totalorder %s25, 3
      %p411 = pnand %p409, %p410
      %p412 = pneg %p411
      // Predicated region
      $region53: #{etc_context.1} parent=5 // pred_check
        _
      $region54: #{etc_context.1} parent=5 // pred_check_branch
        %414 = sbr.rel (%p411) target = $region56
      $region55: #{etc_context.1} parent=5 // pred_region
        %s415 = ssub.s32 %s25, 1
        // Predicated region
        $region57: #{etc_context.1} parent=55 // pred_check
          %p416 = pneg %p218
        $region58: #{etc_context.1} parent=55 // pred_check_branch
          %418 = sbr.rel (%p416) target = $region60
        $region59: #{etc_context.1} parent=55 // pred_region
          %420 = dma.done [#allocation6], 16
        $region60: #{etc_context.1} parent=55 // pred_fallthru
          _
        // Predicated region
        $region61: #{etc_context.1} parent=55 // pred_check
          %p421 = pneg %p239
        $region62: #{etc_context.1} parent=55 // pred_check_branch
          %423 = sbr.rel (%p421) target = $region64
        $region63: #{etc_context.1} parent=55 // pred_region
          %425 = dma.done [#allocation8], 16
        $region64: #{etc_context.1} parent=55 // pred_fallthru
          _
        // Predicated region
        $region65: #{etc_context.1} parent=55 // pred_check
          %p426 = pneg %p260
        $region66: #{etc_context.1} parent=55 // pred_check_branch
          %428 = sbr.rel (%p426) target = $region68
        $region67: #{etc_context.1} parent=55 // pred_region
          %430 = dma.done [#allocation8], 16
        $region68: #{etc_context.1} parent=55 // pred_fallthru
          _
        %431 = sfence
        %p432 = scmp.lt.s32.totalorder %s34, 1
        %s433 = scalar_select %p432, %s34, 1
        %p434 = scmp.lt.s32.totalorder %s35, 0
        %s435 = scalar_select %p434, %s35, 0
        %s436 = sadd.s32 %s435, %s433
        %s437 = smul.addr %s436, 4
        %s438 = scalar_lea.vmem %s0, %s437
        %p439 = pneg %p65
        %p440 = pneg %p62
        %p441 = scmp.lt.s32.totalorder %s34, 1
        %s442 = scalar_select %p441, %s34, 1
        %s443 = smul.addr %s442, 4
        %s444 = scalar_lea.vmem %s1, %s443
        %p445 = pneg %p91
        %p446 = pneg %p88
        %p447 = scmp.lt.s32.totalorder %s34, 1
        %s448 = scalar_select %p447, %s34, 1
        %s449 = smul.addr %s448, 4
        %s450 = scalar_lea.vmem %s2, %s449
        %p451 = pneg %p117
        %p452 = pneg %p114
        %p453 = scmp.lt.s32.totalorder %s34, 1
        %s454 = scalar_select %p453, %s34, 1
        %p455 = scmp.lt.s32.totalorder %s35, 0
        %s456 = scalar_select %p455, %s35, 0
        %s457 = sadd.s32 %s456, %s454
        %s458 = smul.addr %s457, 8
        %s459 = scalar_lea.vmem %s3, %s458
        %p460 = pneg %p145
        %p461 = pneg %p142
        %p462 = scmp.lt.s32.totalorder %s34, 1
        %s463 = scalar_select %p462, %s34, 1
        %s464 = scalar_lea.vmem %s4, %s463
        %p465 = pneg %p171
        %p466 = pneg %p168
        %p467 = scmp.lt.s32.totalorder %s34, 1
        %s468 = scalar_select %p467, %s34, 1
        %s469 = scalar_lea.vmem %s5, %s468
        %p470 = pneg %p197
        %p471 = pneg %p194
        %p472 = pneg %p218
        %p473 = pneg %p215
        %p474 = pneg %p239
        %p475 = pneg %p236
        %p476 = pneg %p260
        %p477 = pneg %p257
        %p478 = pneg %p288
        %p479 = pneg %p285
        %s480 = sand.u32 %s275, 1
        %s481 = scalar_lea.sflag [#allocation5], %s480
        %s482 = sand.u32 %s275, 1
        %s483 = smul.addr %s482, 8
        %s484 = scalar_lea.vmem [#allocation10], %s483
        %p485 = pneg %p314
        %p486 = pneg %p311
        %s487 = sand.u32 %s301, 1
        %s488 = scalar_lea.sflag [#allocation12], %s487
        %s489 = sand.u32 %s301, 1
        %s490 = scalar_lea.vmem [#allocation11], %s489
        %p491 = scmp.lt.s32.totalorder %s34, 1
        %s492 = scalar_select %p491, %s34, 1
        %p493 = scmp.lt.s32.totalorder %s35, 0
        %s494 = scalar_select %p493, %s35, 0
        %s495 = sadd.s32 %s494, %s492
        %s496 = smul.addr %s495, 4
        %s497 = scalar_lea.vmem %s0, %s496
        %p498 = scmp.lt.s32.totalorder %s34, 1
        %s499 = scalar_select %p498, %s34, 1
        %s500 = smul.addr %s499, 4
        %s501 = scalar_lea.vmem %s1, %s500
        %p502 = scmp.lt.s32.totalorder %s34, 1
        %s503 = scalar_select %p502, %s34, 1
        %s504 = smul.addr %s503, 4
        %s505 = scalar_lea.vmem %s2, %s504
        %p506 = scmp.lt.s32.totalorder %s34, 1
        %s507 = scalar_select %p506, %s34, 1
        %p508 = scmp.lt.s32.totalorder %s35, 0
        %s509 = scalar_select %p508, %s35, 0
        %s510 = sadd.s32 %s509, %s507
        %s511 = smul.addr %s510, 8
        %s512 = scalar_lea.vmem %s3, %s511
        %p513 = scmp.lt.s32.totalorder %s34, 1
        %s514 = scalar_select %p513, %s34, 1
        %s515 = scalar_lea.vmem %s4, %s514
        %p516 = scmp.lt.s32.totalorder %s34, 1
        %s517 = scalar_select %p516, %s34, 1
        %s518 = scalar_lea.vmem %s5, %s517
        %v522 = vld [vmem:[%s512] sm:$0xff]
        %vm523 = vcmp.ne.s32.totalorder %v522, 0
        %v524 = vld [vmem:[%s515] sm:$0x1]
        %vm525 = vnez %v524
        %v526 = vsel %vm523, 1, 0
        %527 = vset.pattern.permute.xlu0 0
        %528 = vperm.xlu0 %527, %v526
        %v529 = vpop.permute.xlu0 %528
        %vm530 = vcmp.eq.s32.totalorder %v529, 1
        %v531 = vsel %vm525, 16843009, 0
        %v532 = vunpack.c.0.s8 %v531
        %vm533 = vcmp.ne.s32.totalorder %v532, 0
        %v534 = vsel %vm533, 1, 0
        %v535 = vperm.slane %v534, 0
        %vm536 = vcmp.eq.s32.totalorder %v535, 1
        %vm537 = vmand %vm530, %vm536
        %v538 = vld [vmem:[%s497] sm:$0xf]
        %v539 = vld [vmem:[%s501] sm:$0xf]
        %vm540 = vcmask 64512
        %v542 = vsel %vm540, %v538, 0
        %v545 = vsel %vm540, %v539, 0
        %547 = vmatpush.bf16.xpose.msra.mxu0 0
        %548 = vmatpush.bf16.xpose.msra.mxu0 0
        %549 = vmatpush.bf16.xpose.msra.mxu0 0
        %550 = vmatpush.bf16.xpose.msra.mxu0 0
        %551 = vmatpush.bf16.xpose.msra.mxu0 0
        %552 = vmatpush.bf16.xpose.msra.mxu0 0
        %553 = vmatpush.bf16.xpose.msra.mxu0 0
        %554 = vmatpush.bf16.xpose.msra.mxu0 %v545
        %555 = vmatmul.bf16.gmra.mxu0 %v542
        %v556 = vpop.f32.mrf.mxu0
        %v557 = vadd.f32 0.0, %v556
        %v558 = vpop.f32.mrf.mxu0
        %559 = vdwg.mxu0
        %560 = vst.msk [vmem:[#allocation2] sm:$0xff] %vm540, %v557
        %v561 = vadd.f32 %v557, 0.0
        %v562 = vmul.f32 %v557, %v557
        %v563 = vadd.f32 %v562, 0.0
        %v564 = vld [vmem:[%s497] sm:$0xf]
        %v565 = vld [vmem:[%s501] sm:$0xf]
        %v567 = vunpack.c.l.b16 %v564
        %v568 = vpack.c.b16 %v567, %v567
        %569 = vrot.lane.b32.xlu0 %v568, 120
        %v570 = vpop.permute.xlu0 %569
        %v572 = vunpack.c.l.b16 %v565
        %v573 = vpack.c.b16 %v572, %v572
        %574 = vrot.lane.b32.xlu0 %v573, 120
        %v575 = vpop.permute.xlu0 %574
        %v577 = vsel %vm540, %v570, 0
        %v580 = vsel %vm540, %v575, 0
        %582 = vmatpush.bf16.xpose.msra.mxu0 0
        %583 = vmatpush.bf16.xpose.msra.mxu0 0
        %584 = vmatpush.bf16.xpose.msra.mxu0 0
        %585 = vmatpush.bf16.xpose.msra.mxu0 0
        %586 = vmatpush.bf16.xpose.msra.mxu0 0
        %587 = vmatpush.bf16.xpose.msra.mxu0 0
        %588 = vmatpush.bf16.xpose.msra.mxu0 0
        %589 = vmatpush.bf16.xpose.msra.mxu0 %v580
        %590 = vmatmul.bf16.gmra.mxu0 %v577
        %v591 = vpop.f32.mrf.mxu0
        %v592 = vadd.f32 0.0, %v591
        %v593 = vpop.f32.mrf.mxu0
        %594 = vdwg.mxu0
        %s595 = scalar_lea.vmem [#allocation2], 8
        %596 = vst.msk [vmem:[%s595] sm:$0xff] %vm540, %v592
        %v597 = vadd.f32 %v561, %v592
        %v598 = vmul.f32 %v592, %v592
        %v599 = vadd.f32 %v563, %v598
        %v600 = vld [vmem:[%s497] sm:$0xf]
        %v601 = vld [vmem:[%s501] sm:$0xf]
        %v603 = vunpack.c.l.b16 %v600
        %v604 = vpack.c.b16 %v603, %v603
        %605 = vrot.lane.b32.xlu0 %v604, 112
        %v606 = vpop.permute.xlu0 %605
        %v608 = vunpack.c.l.b16 %v601
        %v609 = vpack.c.b16 %v608, %v608
        %610 = vrot.lane.b32.xlu0 %v609, 112
        %v611 = vpop.permute.xlu0 %610
        %v613 = vsel %vm540, %v606, 0
        %v616 = vsel %vm540, %v611, 0
        %618 = vmatpush.bf16.xpose.msra.mxu0 0
        %619 = vmatpush.bf16.xpose.msra.mxu0 0
        %620 = vmatpush.bf16.xpose.msra.mxu0 0
        %621 = vmatpush.bf16.xpose.msra.mxu0 0
        %622 = vmatpush.bf16.xpose.msra.mxu0 0
        %623 = vmatpush.bf16.xpose.msra.mxu0 0
        %624 = vmatpush.bf16.xpose.msra.mxu0 0
        %625 = vmatpush.bf16.xpose.msra.mxu0 %v616
        %626 = vmatmul.bf16.gmra.mxu0 %v613
        %v627 = vpop.f32.mrf.mxu0
        %v628 = vadd.f32 0.0, %v627
        %v629 = vpop.f32.mrf.mxu0
        %630 = vdwg.mxu0
        %s631 = scalar_lea.vmem [#allocation2], 16
        %632 = vst.msk [vmem:[%s631] sm:$0xff] %vm540, %v628
        %v633 = vadd.f32 %v597, %v628
        %v634 = vmul.f32 %v628, %v628
        %v635 = vadd.f32 %v599, %v634
        %v636 = vld [vmem:[%s497] sm:$0xf]
        %v637 = vld [vmem:[%s501] sm:$0xf]
        %v639 = vunpack.c.l.b16 %v636
        %v640 = vpack.c.b16 %v639, %v639
        %641 = vrot.lane.b32.xlu0 %v640, 104
        %v642 = vpop.permute.xlu0 %641
        %v644 = vunpack.c.l.b16 %v637
        %v645 = vpack.c.b16 %v644, %v644
        %646 = vrot.lane.b32.xlu0 %v645, 104
        %v647 = vpop.permute.xlu0 %646
        %v649 = vsel %vm540, %v642, 0
        %v652 = vsel %vm540, %v647, 0
        %654 = vmatpush.bf16.xpose.msra.mxu0 0
        %655 = vmatpush.bf16.xpose.msra.mxu0 0
        %656 = vmatpush.bf16.xpose.msra.mxu0 0
        %657 = vmatpush.bf16.xpose.msra.mxu0 0
        %658 = vmatpush.bf16.xpose.msra.mxu0 0
        %659 = vmatpush.bf16.xpose.msra.mxu0 0
        %660 = vmatpush.bf16.xpose.msra.mxu0 0
        %661 = vmatpush.bf16.xpose.msra.mxu0 %v652
        %662 = vmatmul.bf16.gmra.mxu0 %v649
        %v663 = vpop.f32.mrf.mxu0
        %v664 = vadd.f32 0.0, %v663
        %v665 = vpop.f32.mrf.mxu0
        %666 = vdwg.mxu0
        %s667 = scalar_lea.vmem [#allocation2], 24
        %668 = vst.msk [vmem:[%s667] sm:$0xff] %vm540, %v664
        %v669 = vadd.f32 %v633, %v664
        %v670 = vmul.f32 %v664, %v664
        %v671 = vadd.f32 %v635, %v670
        %v672 = vmul.f32 %v669, 0.25
        %v673 = vmul.f32 %v671, 0.25
        %v674 = vmul.f32 %v672, %v672
        %v675 = vsub.f32 %v673, %v674
        %v676 = vmax.f32 %v675, 0.0
        %v677 = vadd.f32 %v676, 1e-05
        %v678 = vrsqrt.pop %v677
        %v679 = vmul.f32 %v678, %v677
        %v680 = vmul.f32 %v679, %v678
        %v681 = vmul.f32 0.5, %v680
        %v682 = vsub.f32 1.5, %v681
        %v683 = vmul.f32 %v678, %v682
        %vm684 = vweird.f32 %v677
        %vm685 = vweird.f32 %v678
        %vm686 = vmor %vm684, %vm685
        %v687 = vsel %vm686, %v678, %v683
        %v688 = vld [vmem:[#allocation2] sm:$0xff]
        %v689 = vsub.f32 %v688, %v672
        %v690 = vmul.f32 %v689, %v687
        %s691 = sld [smem:[#allocation7]]
        %v692 = vstv %s691
        %v693 = vmul.f32 %v690, %v692
        %s694 = sld [smem:[#allocation9]]
        %v695 = vstv %s694
        %v696 = vadd.f32 %v693, %v695
        %v697 = vsel %vm537, %v696, -inf
        %v698 = vsel %vm540, %v697, -inf
        %699 = vmax.xlane.f32.xlu0 %v698
        %v700 = vpop.xlane.xlu0 %699
        %vm701 = vweird.f32 %v700
        %vm702 = vmxor %vm701, 1
        %v703 = vsel %vm702, %v700, 0.0
        %v704 = vsub.f32 %v697, %v703
        %v705 = vmul.f32 %v704, 1.442695
        %v706 = vpow.pop %v705
        %v707 = vsel %vm540, %v706, 0.0
        %708 = vadd.xlane.f32.xlu0 %v707
        %v709 = vpop.xlane.xlu0 %708
        %vm710 = vcmp.gt.f32.partialorder %v709, 0.0
        %v711 = vrcp.pop %v709
        %v712 = vmul.f32 %v709, %v711
        %v713 = vsub.f32 1.0, %v712
        %v714 = vmul.f32 %v711, %v713
        %v715 = vadd.f32 %v711, %v714
        %vm716 = vweird.f32 %v709
        %vm717 = vweird.f32 %v711
        %vm718 = vmor %vm716, %vm717
        %v719 = vsel %vm718, %v711, %v715
        %v720 = vand.u32 2147483647, %v709
        %vm721 = vcmp.eq.f32.partialorder %v720, 8.507059e+37
        %v722 = vand.u32 %v709, 2147483648
        %v723 = vor.u32 1.1754944e-38, %v722
        %v724 = vsel %vm721, %v723, %v719
        %v725 = vmul.f32 1.0, %v724
        %v726 = vsel %vm710, %v725, 0.0
        %v727 = vmul.f32 %v706, %v726
        %v728 = vld [vmem:[%s505] sm:$0xf]
        %v729 = vpack.c.bf16 %v727, %v727
        %v731 = vsel %vm540, %v729, 0
        %vm733 = vcmask 1043456
        %v735 = vsel %vm733, %v728, 0
        %737 = vmatpush.bf16.msra.mxu0 0
        %738 = vmatpush.bf16.msra.mxu0 0
        %739 = vmatpush.bf16.msra.mxu0 0
        %740 = vmatpush.bf16.msra.mxu0 0
        %741 = vmatpush.bf16.msra.mxu0 0
        %742 = vmatpush.bf16.msra.mxu0 0
        %743 = vmatpush.bf16.msra.mxu0 0
        %744 = vmatpush.bf16.msra.mxu0 %v735
        %745 = vmatmul.bf16.gmra.mxu0 %v731
        %v746 = vpop.f32.mrf.mxu0
        %v747 = vadd.f32 0.0, %v746
        %v748 = vpop.f32.mrf.mxu0
        %749 = vdwg.mxu0
        %750 = vst.msk [vmem:[%s484] sm:$0xff] %vm540, %v747
        %v751 = vsel %vm540, %v727, 0.0
        %v752 = vrot.slane %v751, 4
        %v753 = vadd.f32 %v751, %v752
        %v754 = vrot.slane %v753, 2
        %v755 = vadd.f32 %v753, %v754
        %v756 = vrot.slane %v755, 1
        %v757 = vadd.f32 %v755, %v756
        %v758 = vadd.f32 %v757, 0.0
        %v759 = vld [vmem:[%s595] sm:$0xff]
        %v760 = vsub.f32 %v759, %v672
        %v761 = vmul.f32 %v760, %v687
        %s762 = sld [smem:[#allocation7 + $0x1]]
        %v763 = vstv %s762
        %v764 = vmul.f32 %v761, %v763
        %s765 = sld [smem:[#allocation9 + $0x1]]
        %v766 = vstv %s765
        %v767 = vadd.f32 %v764, %v766
        %v768 = vsel %vm537, %v767, -inf
        %v769 = vsel %vm540, %v768, -inf
        %770 = vmax.xlane.f32.xlu0 %v769
        %v771 = vpop.xlane.xlu0 %770
        %vm772 = vweird.f32 %v771
        %vm773 = vmxor %vm772, 1
        %v774 = vsel %vm773, %v771, 0.0
        %v775 = vsub.f32 %v768, %v774
        %v776 = vmul.f32 %v775, 1.442695
        %v777 = vpow.pop %v776
        %v778 = vsel %vm540, %v777, 0.0
        %779 = vadd.xlane.f32.xlu0 %v778
        %v780 = vpop.xlane.xlu0 %779
        %vm781 = vcmp.gt.f32.partialorder %v780, 0.0
        %v782 = vrcp.pop %v780
        %v783 = vmul.f32 %v780, %v782
        %v784 = vsub.f32 1.0, %v783
        %v785 = vmul.f32 %v782, %v784
        %v786 = vadd.f32 %v782, %v785
        %vm787 = vweird.f32 %v780
        %vm788 = vweird.f32 %v782
        %vm789 = vmor %vm787, %vm788
        %v790 = vsel %vm789, %v782, %v786
        %v791 = vand.u32 2147483647, %v780
        %vm792 = vcmp.eq.f32.partialorder %v791, 8.507059e+37
        %v793 = vand.u32 %v780, 2147483648
        %v794 = vor.u32 1.1754944e-38, %v793
        %v795 = vsel %vm792, %v794, %v790
        %v796 = vmul.f32 1.0, %v795
        %v797 = vsel %vm781, %v796, 0.0
        %v798 = vmul.f32 %v777, %v797
        %v799 = vld [vmem:[%s505] sm:$0xf]
        %v800 = vpack.c.bf16 %v798, %v798
        %v802 = vunpack.c.l.b16 %v799
        %v803 = vpack.c.b16 %v802, %v802
        %804 = vrot.lane.b32.xlu0 %v803, 120
        %v805 = vpop.permute.xlu0 %804
        %v807 = vsel %vm540, %v800, 0
        %v810 = vsel %vm733, %v805, 0
        %812 = vmatpush.bf16.msra.mxu0 0
        %813 = vmatpush.bf16.msra.mxu0 0
        %814 = vmatpush.bf16.msra.mxu0 0
        %815 = vmatpush.bf16.msra.mxu0 0
        %816 = vmatpush.bf16.msra.mxu0 0
        %817 = vmatpush.bf16.msra.mxu0 0
        %818 = vmatpush.bf16.msra.mxu0 0
        %819 = vmatpush.bf16.msra.mxu0 %v810
        %820 = vmatmul.bf16.gmra.mxu0 %v807
        %v821 = vpop.f32.mrf.mxu0
        %v822 = vadd.f32 0.0, %v821
        %v823 = vpop.f32.mrf.mxu0
        %824 = vdwg.mxu0
        %826 = vrot.lane.b32.xlu0 %v822, 8
        %v827 = vpop.permute.xlu0 %826
        %vm829 = vcmask 130112
        %830 = vst.msk [vmem:[%s484] sm:$0xff] %vm829, %v827
        %v831 = vsel %vm540, %v798, 0.0
        %v832 = vrot.slane %v831, 4
        %v833 = vadd.f32 %v831, %v832
        %v834 = vrot.slane %v833, 2
        %v835 = vadd.f32 %v833, %v834
        %v836 = vrot.slane %v835, 1
        %v837 = vadd.f32 %v835, %v836
        %v838 = vadd.f32 %v758, %v837
        %v839 = vld [vmem:[%s631] sm:$0xff]
        %v840 = vsub.f32 %v839, %v672
        %v841 = vmul.f32 %v840, %v687
        %s842 = sld [smem:[#allocation7 + $0x2]]
        %v843 = vstv %s842
        %v844 = vmul.f32 %v841, %v843
        %s845 = sld [smem:[#allocation9 + $0x2]]
        %v846 = vstv %s845
        %v847 = vadd.f32 %v844, %v846
        %v848 = vsel %vm537, %v847, -inf
        %v849 = vsel %vm540, %v848, -inf
        %850 = vmax.xlane.f32.xlu0 %v849
        %v851 = vpop.xlane.xlu0 %850
        %vm852 = vweird.f32 %v851
        %vm853 = vmxor %vm852, 1
        %v854 = vsel %vm853, %v851, 0.0
        %v855 = vsub.f32 %v848, %v854
        %v856 = vmul.f32 %v855, 1.442695
        %v857 = vpow.pop %v856
        %v858 = vsel %vm540, %v857, 0.0
        %859 = vadd.xlane.f32.xlu0 %v858
        %v860 = vpop.xlane.xlu0 %859
        %vm861 = vcmp.gt.f32.partialorder %v860, 0.0
        %v862 = vrcp.pop %v860
        %v863 = vmul.f32 %v860, %v862
        %v864 = vsub.f32 1.0, %v863
        %v865 = vmul.f32 %v862, %v864
        %v866 = vadd.f32 %v862, %v865
        %vm867 = vweird.f32 %v860
        %vm868 = vweird.f32 %v862
        %vm869 = vmor %vm867, %vm868
        %v870 = vsel %vm869, %v862, %v866
        %v871 = vand.u32 2147483647, %v860
        %vm872 = vcmp.eq.f32.partialorder %v871, 8.507059e+37
        %v873 = vand.u32 %v860, 2147483648
        %v874 = vor.u32 1.1754944e-38, %v873
        %v875 = vsel %vm872, %v874, %v870
        %v876 = vmul.f32 1.0, %v875
        %v877 = vsel %vm861, %v876, 0.0
        %v878 = vmul.f32 %v857, %v877
        %v879 = vld [vmem:[%s505] sm:$0xf]
        %v880 = vpack.c.bf16 %v878, %v878
        %v882 = vunpack.c.l.b16 %v879
        %v883 = vpack.c.b16 %v882, %v882
        %884 = vrot.lane.b32.xlu0 %v883, 112
        %v885 = vpop.permute.xlu0 %884
        %v887 = vsel %vm540, %v880, 0
        %v890 = vsel %vm733, %v885, 0
        %892 = vmatpush.bf16.msra.mxu0 0
        %893 = vmatpush.bf16.msra.mxu0 0
        %894 = vmatpush.bf16.msra.mxu0 0
        %895 = vmatpush.bf16.msra.mxu0 0
        %896 = vmatpush.bf16.msra.mxu0 0
        %897 = vmatpush.bf16.msra.mxu0 0
        %898 = vmatpush.bf16.msra.mxu0 0
        %899 = vmatpush.bf16.msra.mxu0 %v890
        %900 = vmatmul.bf16.gmra.mxu0 %v887
        %v901 = vpop.f32.mrf.mxu0
        %v902 = vadd.f32 0.0, %v901
        %v903 = vpop.f32.mrf.mxu0
        %904 = vdwg.mxu0
        %906 = vrot.lane.b32.xlu0 %v902, 16
        %v907 = vpop.permute.xlu0 %906
        %vm909 = vcmask 195712
        %910 = vst.msk [vmem:[%s484] sm:$0xff] %vm909, %v907
        %v911 = vsel %vm540, %v878, 0.0
        %v912 = vrot.slane %v911, 4
        %v913 = vadd.f32 %v911, %v912
        %v914 = vrot.slane %v913, 2
        %v915 = vadd.f32 %v913, %v914
        %v916 = vrot.slane %v915, 1
        %v917 = vadd.f32 %v915, %v916
        %v918 = vadd.f32 %v838, %v917
        %v919 = vld [vmem:[%s667] sm:$0xff]
        %v920 = vsub.f32 %v919, %v672
        %v921 = vmul.f32 %v920, %v687
        %s922 = sld [smem:[#allocation7 + $0x3]]
        %v923 = vstv %s922
        %v924 = vmul.f32 %v921, %v923
        %s925 = sld [smem:[#allocation9 + $0x3]]
        %v926 = vstv %s925
        %v927 = vadd.f32 %v924, %v926
        %v928 = vsel %vm537, %v927, -inf
        %v929 = vsel %vm540, %v928, -inf
        %930 = vmax.xlane.f32.xlu0 %v929
        %v931 = vpop.xlane.xlu0 %930
        %vm932 = vweird.f32 %v931
        %vm933 = vmxor %vm932, 1
        %v934 = vsel %vm933, %v931, 0.0
        %v935 = vsub.f32 %v928, %v934
        %v936 = vmul.f32 %v935, 1.442695
        %v937 = vpow.pop %v936
        %v938 = vsel %vm540, %v937, 0.0
        %939 = vadd.xlane.f32.xlu0 %v938
        %v940 = vpop.xlane.xlu0 %939
        %vm941 = vcmp.gt.f32.partialorder %v940, 0.0
        %v942 = vrcp.pop %v940
        %v943 = vmul.f32 %v940, %v942
        %v944 = vsub.f32 1.0, %v943
        %v945 = vmul.f32 %v942, %v944
        %v946 = vadd.f32 %v942, %v945
        %vm947 = vweird.f32 %v940
        %vm948 = vweird.f32 %v942
        %vm949 = vmor %vm947, %vm948
        %v950 = vsel %vm949, %v942, %v946
        %v951 = vand.u32 2147483647, %v940
        %vm952 = vcmp.eq.f32.partialorder %v951, 8.507059e+37
        %v953 = vand.u32 %v940, 2147483648
        %v954 = vor.u32 1.1754944e-38, %v953
        %v955 = vsel %vm952, %v954, %v950
        %v956 = vmul.f32 1.0, %v955
        %v957 = vsel %vm941, %v956, 0.0
        %v958 = vmul.f32 %v937, %v957
        %v959 = vld [vmem:[%s505] sm:$0xf]
        %v960 = vpack.c.bf16 %v958, %v958
        %v962 = vunpack.c.l.b16 %v959
        %v963 = vpack.c.b16 %v962, %v962
        %964 = vrot.lane.b32.xlu0 %v963, 104
        %v965 = vpop.permute.xlu0 %964
        %v967 = vsel %vm540, %v960, 0
        %v970 = vsel %vm733, %v965, 0
        %972 = vmatpush.bf16.msra.mxu0 0
        %973 = vmatpush.bf16.msra.mxu0 0
        %974 = vmatpush.bf16.msra.mxu0 0
        %975 = vmatpush.bf16.msra.mxu0 0
        %976 = vmatpush.bf16.msra.mxu0 0
        %977 = vmatpush.bf16.msra.mxu0 0
        %978 = vmatpush.bf16.msra.mxu0 0
        %979 = vmatpush.bf16.msra.mxu0 %v970
        %980 = vmatmul.bf16.gmra.mxu0 %v967
        %v981 = vpop.f32.mrf.mxu0
        %v982 = vadd.f32 0.0, %v981
        %v983 = vpop.f32.mrf.mxu0
        %984 = vdwg.mxu0
        %986 = vrot.lane.b32.xlu0 %v982, 24
        %v987 = vpop.permute.xlu0 %986
        %vm989 = vcmask 261312
        %990 = vst.msk [vmem:[%s484] sm:$0xff] %vm989, %v987
        %v991 = vsel %vm540, %v958, 0.0
        %v992 = vrot.slane %v991, 4
        %v993 = vadd.f32 %v991, %v992
        %v994 = vrot.slane %v993, 2
        %v995 = vadd.f32 %v993, %v994
        %v996 = vrot.slane %v995, 1
        %v997 = vadd.f32 %v995, %v996
        %v998 = vadd.f32 %v918, %v997
        %p999 = scmp.eq.s32.totalorder %s35, 0
        // Predicated region
        $region69: #{etc_context.1} parent=55 // pred_check
          %p1000 = pneg %p999
        $region70: #{etc_context.1} parent=55 // pred_check_branch
          %1002 = sbr.rel (%p1000) target = $region72
        $region71: #{etc_context.1} parent=55 // pred_region
          %vm1003 = vcmask 57344
          %1004 = vst.msk [vmem:[#allocation3] sm:$0x1] %vm1003, 0.0
        $region72: #{etc_context.1} parent=55 // pred_fallthru
          _
        %v1005 = vld [vmem:[#allocation3] sm:$0x1]
        %v1006 = vadd.f32 %v1005, %v998
        %vm1007 = vcmask 57344
        %1008 = vst.msk [vmem:[#allocation3] sm:$0x1] %vm1007, %v1006
        // Predicated region
        $region73: #{etc_context.1} parent=55 // pred_check
          %p1009 = pneg %p999
        $region74: #{etc_context.1} parent=55 // pred_check_branch
          %1011 = sbr.rel (%p1009) target = $region76
        $region75: #{etc_context.1} parent=55 // pred_region
          %s1012 = sld [smem:[#allocation4 + %s34]]
          %v1013 = vld [vmem:[#allocation3] sm:$0x1]
          %v1014 = vmul.f32 %v1013, 0.25
          %v1015 = vstv %s1012
          %v1016 = vrcp.pop %v1015
          %v1017 = vmul.f32 %v1015, %v1016
          %v1018 = vsub.f32 1.0, %v1017
          %v1019 = vmul.f32 %v1016, %v1018
          %v1020 = vadd.f32 %v1016, %v1019
          %vm1021 = vweird.f32 %v1015
          %vm1022 = vweird.f32 %v1016
          %vm1023 = vmor %vm1021, %vm1022
          %v1024 = vsel %vm1023, %v1016, %v1020
          %v1025 = vand.u32 2147483647, %v1015
          %vm1026 = vcmp.eq.f32.partialorder %v1025, 8.507059e+37
          %v1027 = vand.u32 %v1015, 2147483648
          %v1028 = vor.u32 1.1754944e-38, %v1027
          %v1029 = vsel %vm1026, %v1028, %v1024
          %v1030 = vmul.f32 %v1014, %v1029
          %v1031 = vld [vmem:[%s518] sm:$0x1]
          %vm1032 = vnez %v1031
          %v1033 = vsel %vm1032, 16843009, 0
          %v1034 = vunpack.c.0.s8 %v1033
          %vm1035 = vcmp.ne.s32.totalorder %v1034, 0
          %v1036 = vsel %vm1035, -inf, %v1030
          %v1037 = vsel %vm1007, %v1036, -inf
          %1038 = vmax.xlane.f32.xlu0 %v1037
          %v1039 = vpop.xlane.xlu0 %1038
          %vm1040 = vweird.f32 %v1039
          %vm1041 = vmxor %vm1040, 1
          %v1042 = vsel %vm1041, %v1039, 0.0
          %v1043 = vsub.f32 %v1036, %v1042
          %v1044 = vmul.f32 %v1043, 1.442695
          %v1045 = vpow.pop %v1044
          %v1046 = vsel %vm1007, %v1045, 0.0
          %1047 = vadd.xlane.f32.xlu0 %v1046
          %v1048 = vpop.xlane.xlu0 %1047
          %vm1049 = vcmp.gt.f32.partialorder %v1048, 0.0
          %v1050 = vrcp.pop %v1048
          %v1051 = vmul.f32 %v1048, %v1050
          %v1052 = vsub.f32 1.0, %v1051
          %v1053 = vmul.f32 %v1050, %v1052
          %v1054 = vadd.f32 %v1050, %v1053
          %vm1055 = vweird.f32 %v1048
          %vm1056 = vweird.f32 %v1050
          %vm1057 = vmor %vm1055, %vm1056
          %v1058 = vsel %vm1057, %v1050, %v1054
          %v1059 = vand.u32 2147483647, %v1048
          %vm1060 = vcmp.eq.f32.partialorder %v1059, 8.507059e+37
          %v1061 = vand.u32 %v1048, 2147483648
          %v1062 = vor.u32 1.1754944e-38, %v1061
          %v1063 = vsel %vm1060, %v1062, %v1058
          %v1064 = vmul.f32 1.0, %v1063
          %v1065 = vsel %vm1049, %v1064, 0.0
          %v1066 = vmul.f32 %v1045, %v1065
          %1067 = vst.msk [vmem:[%s490] sm:$0x1] %vm1007, %v1066
        $region76: #{etc_context.1} parent=55 // pred_fallthru
          _
        %s1068 = sand.u32 %s275, 1
        %s1069 = scalar_lea.sflag [#allocation5], %s1068
        %s1070 = sand.u32 %s275, 1
        %s1071 = smul.addr %s1070, 8
        %s1072 = scalar_lea.vmem [#allocation10], %s1071
        %s1073 = sand.u32 %s301, 1
        %s1074 = scalar_lea.sflag [#allocation12], %s1073
        %s1075 = sand.u32 %s301, 1
        %s1076 = scalar_lea.vmem [#allocation11], %s1075
        // Predicated region
        $region77: #{etc_context.1} parent=55 // pred_check
          %p1077 = pneg %p285
        $region78: #{etc_context.1} parent=55 // pred_check_branch
          %1079 = sbr.rel (%p1077) target = $region80
        $region79: #{etc_context.1} parent=55 // pred_region
          %1081 = vsyncadd %s1069, 0
          %s1082 = sadd.s32 %s35, %s34
          %s1083 = smul.addr %s1082, 8
          %s1084 = scalar_lea.hbm %s9, %s1083
          %s1086 = sshll.u32 %s1072, 4
          %s1087 = int_to_ptr.vmem [resolvable:$true] %s1086
          %s1088 = sshll.u32 %s1084, 4
          %s1089 = int_to_ptr.hbm [resolvable:$true] %s1088
          %1091 = dma.vmem_to_hbm [thread:$0]  %s1087, 128, %s1089, %s1069
        $region80: #{etc_context.1} parent=55 // pred_fallthru
          _
        // Predicated region
        $region81: #{etc_context.1} parent=55 // pred_check
          %p1092 = pneg %p311
        $region82: #{etc_context.1} parent=55 // pred_check_branch
          %1094 = sbr.rel (%p1092) target = $region84
        $region83: #{etc_context.1} parent=55 // pred_region
          %1096 = vsyncadd %s1074, 0
          %s1097 = scalar_lea.hbm %s10, %s34
          %s1099 = sshll.u32 %s1076, 4
          %s1100 = int_to_ptr.vmem [resolvable:$true] %s1099
          %s1101 = sshll.u32 %s1097, 4
          %s1102 = int_to_ptr.hbm [resolvable:$true] %s1101
          %1104 = dma.vmem_to_hbm [thread:$0]  %s1100, 16, %s1102, %s1074
        $region84: #{etc_context.1} parent=55 // pred_fallthru
          _
      $region56: #{etc_context.1} parent=5 // pred_fallthru
        _
      %p1105 = scmp.le.s32.totalorder 2, %s25
      // Predicated region
      $region85: #{etc_context.1} parent=5 // pred_check
        %p1106 = pneg %p1105
      $region86: #{etc_context.1} parent=5 // pred_check_branch
        %1108 = sbr.rel (%p1106) target = $region88
      $region87: #{etc_context.1} parent=5 // pred_region
        %s1109 = ssub.s32 %s25, 2
        // Predicated region
        $region89: #{etc_context.1} parent=87 // pred_check
          %p1110 = pneg %p291
        $region90: #{etc_context.1} parent=87 // pred_check_branch
          %1112 = sbr.rel (%p1110) target = $region92
        $region91: #{etc_context.1} parent=87 // pred_region
          %s1113 = sand.u32 %s276, 1
          %s1114 = scalar_lea.sflag [#allocation5], %s1113
          %s1115 = sand.u32 %s276, 1
          %s1116 = smul.addr %s1115, 8
          %s1117 = scalar_lea.vmem [#allocation10], %s1116
          %1119 = dma.done %s1114, 128
        $region92: #{etc_context.1} parent=87 // pred_fallthru
          _
        // Predicated region
        $region93: #{etc_context.1} parent=87 // pred_check
          %p1120 = pneg %p317
        $region94: #{etc_context.1} parent=87 // pred_check_branch
          %1122 = sbr.rel (%p1120) target = $region96
        $region95: #{etc_context.1} parent=87 // pred_region
          %s1123 = sand.u32 %s302, 1
          %s1124 = scalar_lea.sflag [#allocation12], %s1123
          %s1125 = sand.u32 %s302, 1
          %s1126 = scalar_lea.vmem [#allocation11], %s1125
          %1128 = dma.done %s1124, 16
        $region96: #{etc_context.1} parent=87 // pred_fallthru
          _
      $region88: #{etc_context.1} parent=5 // pred_fallthru
        _
    $region6: #{etc_context.1} parent=1 // loop_footer
      %s29 = sadd.s32 1, %s25
    $region7: #{etc_context.1} parent=1 // loop_footer_branch
      %24 = sbr.rel target = $region3
    $region8: #{etc_context.1} parent=1 // loop_exit
      _
    %1129 = vsyncpa [#allocation5], 1
    %s1130 = scalar_lea.sflag [#allocation5], 1
    %1131 = vsyncpa %s1130, 1
    %1132 = vsyncpa [#allocation12], 1
    %s1133 = scalar_lea.sflag [#allocation12], 1
    %1134 = vsyncpa %s1133, 1
    %1135 = vsyncpa [#allocation6], 1
    %s1136 = scalar_lea.sflag [#allocation6], 1
    %1137 = vsyncpa %s1136, 1
    %1138 = vsyncpa [#allocation8], 1

</llo_original>
